<compile_context>
chip_gen: v7x
topology: tpu7x:2x2x1
jax: 0.10.0
libtpu: 0.0.40
codegen_flags: <defaults>
</compile_context>

<pallas_src>
import functools

import jax
import jax.numpy as jnp
import numpy as np
from jax.experimental import pallas as pl
from jax.experimental.pallas import tpu as pltpu


def _round_up(x, m):
    return (x + m - 1) // m * m


def _pick_d_tile(Do, Ho, Wo, c_tot, cout_p, cout, x_block_bytes,
                 target_m=512, vmem_budget=24 * 1024 * 1024):
    """Depth tile: smallest divisor of Do reaching M >= target_m (feeds the 256-wide
    MXU on v6e/v7x) that fits the VMEM budget; otherwise the largest that fits."""
    divisors = [d for d in range(1, Do + 1) if Do % d == 0]

    def live_bytes(d):
        M = d * Ho * Wo
        return (2 * x_block_bytes          # double-buffered input block
                + 2 * c_tot * cout_p * 2   # bf16 weight (conservatively x2)
                + M * c_tot * 2            # bf16 im2col patch value
                + 2 * M * cout_p * 4       # f32 matmul result + epilogue temps
                + 2 * M * cout * 2)        # double-buffered bf16 output block

    fitting = [d for d in divisors if live_bytes(d) <= vmem_budget]
    if not fitting:
        return 1
    reach = [d for d in fitting if d * Ho * Wo >= target_m]
    if reach:
        return min(reach)
    return max(fitting)


def _conv3d_prelu_kernel(x_ref, w_ref, b_ref, alpha_ref, o_ref,
                         *, TD, Ho, Wo, K, LANES, Cout):
    # x_ref:     (1, Dp, Hp, Wo, LANES)   bf16; lane = kw*Cin + c (kw-taps pre-packed)
    # w_ref:     (K*K*LANES, Cout_p)      bf16; block b = kd*K+kh, lane = kw*Cin + c
    # b_ref:     (1, Cout_p)              f32
    # alpha_ref: (1, 1)                   f32 in SMEM (PReLU shared slope)
    # o_ref:     (1, TD, Ho, Wo, Cout)    bf16 (real channels only)
    t = pl.program_id(1)
    d0 = pl.multiple_of(t * TD, TD)       # first padded-input depth plane of this tile

    # im2col: one lane-dense block per (kd, kh). All slices are tile-granular
    # (depth / height are untiled dims, kw is already folded into lanes), so the
    # concatenate just stacks full 128-lane blocks -- no relayouts.
    pieces = []
    for kd in range(K):
        for kh in range(K):
            pieces.append(x_ref[0, pl.ds(d0 + kd, TD), kh:kh + Ho, :, :])
    patch = jnp.concatenate(pieces, axis=-1)            # (TD, Ho, Wo, K*K*LANES)
    M = TD * Ho * Wo
    patch2d = patch.reshape(M, K * K * LANES)

    # Single MXU matmul: (M, K*K*LANES) @ (K*K*LANES, Cout_p), f32 accumulation.
    acc = jnp.dot(patch2d, w_ref[...], preferred_element_type=jnp.float32)

    # f32 epilogue: bias + PReLU (single shared slope).
    acc = acc + b_ref[...]
    alpha = alpha_ref[0, 0]
    out = jnp.where(acc > 0, acc, alpha * acc)

    # Drop padded Cout lanes, store bf16: ~8x less output HBM traffic than padded f32.
    out = out[:, :Cout].reshape(1, TD, Ho, Wo, Cout)
    o_ref[...] = out.astype(o_ref.dtype)


def branch_block_3d_forward(x_ncdhw, weight_oikkk, bias, alpha, padding=1, d_tile=None):
    """x_ncdhw: (N, Cin, D, H, W); weight_oikkk: (Cout, Cin, K, K, K); bias: (Cout,)."""
    N, Cin, D, H, W = x_ncdhw.shape
    Cout, _, K, _, _ = weight_oikkk.shape
    p = padding
    Do, Ho, Wo = D + 2 * p - K + 1, H + 2 * p - K + 1, W + 2 * p - K + 1
    Dp, Hp, Wp = D + 2 * p, H + 2 * p, W + 2 * p

    LANES = _round_up(K * Cin, 128)        # one lane block per (kd, kh); holds K kw-taps
    Cout_p = _round_up(Cout, 128)
    C_TOT = K * K * LANES                  # contraction length (1152 for Cin=32, K=3)

    # ---- layout glue (plain JAX) ------------------------------------------------
    # NCDHW -> NDHWC, spatial pad, then pack the K kw-taps into the lane dim.
    x_ndhwc = jnp.transpose(x_ncdhw, (0, 2, 3, 4, 1))
    xp = jnp.pad(x_ndhwc, ((0, 0), (p, p), (p, p), (p, p), (0, 0)))
    x_kw = jnp.concatenate([xp[:, :, :, kw:kw + Wo, :] for kw in range(K)], axis=-1)
    x_kw = jnp.pad(x_kw, ((0, 0), (0, 0), (0, 0), (0, 0),
                          (0, LANES - K * Cin))).astype(jnp.bfloat16)   # (N,Dp,Hp,Wo,LANES)

    # Weight: (Cout,Cin,kd,kh,kw) -> blocks of (kd*K+kh) x lane(kw*Cin+c) x Cout.
    w = jnp.transpose(weight_oikkk, (2, 3, 4, 1, 0)).reshape(K * K, K * Cin, Cout)
    w = jnp.pad(w, ((0, 0), (0, LANES - K * Cin), (0, Cout_p - Cout)))
    w2 = w.reshape(C_TOT, Cout_p).astype(jnp.bfloat16)

    b2 = jnp.pad(bias.astype(jnp.float32), (0, Cout_p - Cout)).reshape(1, Cout_p)
    a2 = jnp.asarray(alpha, jnp.float32).reshape(1, 1)

    # ---- depth tile ---------------------------------------------------------------
    x_block_bytes = Dp * Hp * Wo * LANES * 2
    if d_tile is None:
        d_tile = _pick_d_tile(Do, Ho, Wo, C_TOT, Cout_p, Cout, x_block_bytes)
    assert Do % d_tile == 0
    T = Do // d_tile

    kernel = functools.partial(_conv3d_prelu_kernel, TD=d_tile, Ho=Ho, Wo=Wo,
                               K=K, LANES=LANES, Cout=Cout)

    out_ndhwc = pl.pallas_call(
        kernel,
        out_shape=jax.ShapeDtypeStruct((N, Do, Ho, Wo, Cout), jnp.bfloat16),
        grid=(N, T),
        in_specs=[
            pl.BlockSpec((1, Dp, Hp, Wo, LANES), lambda n, t: (n, 0, 0, 0, 0)),
            pl.BlockSpec((C_TOT, Cout_p), lambda n, t: (0, 0)),
            pl.BlockSpec((1, Cout_p), lambda n, t: (0, 0)),
            pl.BlockSpec((1, 1), lambda n, t: (0, 0),
                         memory_space=pltpu.MemorySpace.SMEM),
        ],
        out_specs=pl.BlockSpec((1, d_tile, Ho, Wo, Cout),
                               lambda n, t: (n, t, 0, 0, 0)),
        compiler_params=pltpu.CompilerParams(
            dimension_semantics=("parallel", "parallel"),
            vmem_limit_bytes=48 * 1024 * 1024),
    )(x_kw, w2, b2, a2)

    # NDHWC bf16 -> NCDHW f32 (PyTorch module convention).
    return jnp.transpose(out_ndhwc, (0, 4, 1, 2, 3)).astype(jnp.float32)


def _reference(x_ncdhw, weight_oikkk, bias, alpha, padding=1):
    """Pure-JAX reference (lax conv) using the same bf16 operands, f32 accumulation."""
    x = jnp.transpose(x_ncdhw, (0, 2, 3, 4, 1)).astype(jnp.bfloat16)
    w = jnp.transpose(weight_oikkk, (2, 3, 4, 1, 0)).astype(jnp.bfloat16)
    y = jax.lax.conv_general_dilated(
        x, w, window_strides=(1, 1, 1),
        padding=[(padding, padding)] * 3,
        dimension_numbers=('NDHWC', 'DHWIO', 'NDHWC'),
        preferred_element_type=jnp.float32)
    y = y + bias.astype(jnp.float32)
    y = jnp.where(y > 0, y, jnp.float32(alpha) * y)
    return jnp.transpose(y, (0, 4, 1, 2, 3))


if __name__ == "__main__":
    # Small, module-consistent shapes: Conv3d(32 -> 32, k=3, pad=1), NCDHW input.
    N, Cin, Cout, K, P = 2, 32, 32, 3, 1
    D, H, W = 4, 8, 8

    key = jax.random.PRNGKey(0)
    kx, kw, kb = jax.random.split(key, 3)

    x = jax.random.normal(kx, (N, Cin, D, H, W), dtype=jnp.float32)

    # Deterministic parameter init mimicking PyTorch Conv3d defaults
    # (uniform in [-1/sqrt(fan_in), 1/sqrt(fan_in)]).
    fan_in = Cin * K * K * K
    bound = 1.0 / np.sqrt(fan_in)
    weight = jax.random.uniform(kw, (Cout, Cin, K, K, K),
                                minval=-bound, maxval=bound, dtype=jnp.float32)
    bias = jax.random.uniform(kb, (Cout,), minval=-bound, maxval=bound,
                              dtype=jnp.float32)
    alpha = jnp.float32(0.25)   # nn.PReLU() default single shared slope

    out = branch_block_3d_forward(x, weight, bias, alpha, padding=P)
    out = jax.block_until_ready(out)

    ref = jax.block_until_ready(_reference(x, weight, bias, alpha, padding=P))

    assert out.shape == (N, Cout, D, H, W), out.shape
    # Kernel output passes through bf16 (per perf review), so allow bf16-level error.
    if not np.allclose(np.asarray(out), np.asarray(ref), atol=2e-2, rtol=2e-2):
        err = np.max(np.abs(np.asarray(out) - np.asarray(ref)))
        raise AssertionError(f"Pallas kernel does not match reference conv3d+PReLU "
                             f"(max abs err {err})")

    print("KERNEL_OK")
</pallas_src>

<mosaic_0001>
module attributes {stable_mosaic.version = 11 : i64} {
  func.func @_conv3d_prelu_kernel(%arg0: i32, %arg1: i32, %arg2: memref<1x6x10x8x128xbf16, #tpu.memory_space<vmem>>, %arg3: memref<1152x128xbf16, #tpu.memory_space<vmem>>, %arg4: memref<1x128xf32, #tpu.memory_space<vmem>>, %arg5: memref<1x1xf32, #tpu.memory_space<smem>>, %arg6: memref<1x4x8x8x32xbf16, #tpu.memory_space<vmem>>) attributes {dimension_semantics = [#tpu.dimension_semantics<parallel>, #tpu.dimension_semantics<parallel>], iteration_bounds = array<i64: 2, 1>, scalar_prefetch = 0 : i64, scratch_operands = 0 : i64, tpu.core_type = #tpu.core_type<tc>, window_params = [{transform_indices = @transform_0, window_bounds = array<i64: 1, 6, 10, 8, 128>}, {pipeline_mode = #tpu.pipeline_mode<synchronous>, transform_indices = @transform_1, window_bounds = array<i64: 1152, 128>}, {pipeline_mode = #tpu.pipeline_mode<synchronous>, transform_indices = @transform_2, window_bounds = array<i64: 1, 128>}, {transform_indices = @transform_3, window_bounds = array<i64: 1, 1>}, {transform_indices = @transform_4, window_bounds = array<i64: 1, 4, 8, 8, 32>}]} {
    %c4_i32 = arith.constant 4 : i32
    %0 = arith.muli %arg1, %c4_i32 : i32
    %1 = tpu.assume_multiple %0, 4 : i32
    %c0_i32 = arith.constant 0 : i32
    %2 = arith.addi %1, %c0_i32 : i32
    %c0 = arith.constant 0 : index
    %3 = arith.index_cast %2 : i32 to index
    %c0_0 = arith.constant 0 : index
    %c0_1 = arith.constant 0 : index
    %c0_2 = arith.constant 0 : index
    %4 = vector.load %arg2[%c0, %3, %c0_0, %c0_1, %c0_2] : memref<1x6x10x8x128xbf16, #tpu.memory_space<vmem>>, vector<1x4x8x8x128xbf16>
    %5 = vector.shape_cast %4 : vector<1x4x8x8x128xbf16> to vector<4x8x8x128xbf16>
    %c0_i32_3 = arith.constant 0 : i32
    %6 = arith.addi %1, %c0_i32_3 : i32
    %c0_4 = arith.constant 0 : index
    %7 = arith.index_cast %6 : i32 to index
    %c1 = arith.constant 1 : index
    %c0_5 = arith.constant 0 : index
    %c0_6 = arith.constant 0 : index
    %8 = vector.load %arg2[%c0_4, %7, %c1, %c0_5, %c0_6] : memref<1x6x10x8x128xbf16, #tpu.memory_space<vmem>>, vector<1x4x8x8x128xbf16>
    %9 = vector.shape_cast %8 : vector<1x4x8x8x128xbf16> to vector<4x8x8x128xbf16>
    %c0_i32_7 = arith.constant 0 : i32
    %10 = arith.addi %1, %c0_i32_7 : i32
    %c0_8 = arith.constant 0 : index
    %11 = arith.index_cast %10 : i32 to index
    %c2 = arith.constant 2 : index
    %c0_9 = arith.constant 0 : index
    %c0_10 = arith.constant 0 : index
    %12 = vector.load %arg2[%c0_8, %11, %c2, %c0_9, %c0_10] : memref<1x6x10x8x128xbf16, #tpu.memory_space<vmem>>, vector<1x4x8x8x128xbf16>
    %13 = vector.shape_cast %12 : vector<1x4x8x8x128xbf16> to vector<4x8x8x128xbf16>
    %c1_i32 = arith.constant 1 : i32
    %14 = arith.addi %1, %c1_i32 : i32
    %c0_11 = arith.constant 0 : index
    %15 = arith.index_cast %14 : i32 to index
    %c0_12 = arith.constant 0 : index
    %c0_13 = arith.constant 0 : index
    %c0_14 = arith.constant 0 : index
    %16 = vector.load %arg2[%c0_11, %15, %c0_12, %c0_13, %c0_14] : memref<1x6x10x8x128xbf16, #tpu.memory_space<vmem>>, vector<1x4x8x8x128xbf16>
    %17 = vector.shape_cast %16 : vector<1x4x8x8x128xbf16> to vector<4x8x8x128xbf16>
    %c1_i32_15 = arith.constant 1 : i32
    %18 = arith.addi %1, %c1_i32_15 : i32
    %c0_16 = arith.constant 0 : index
    %19 = arith.index_cast %18 : i32 to index
    %c1_17 = arith.constant 1 : index
    %c0_18 = arith.constant 0 : index
    %c0_19 = arith.constant 0 : index
    %20 = vector.load %arg2[%c0_16, %19, %c1_17, %c0_18, %c0_19] : memref<1x6x10x8x128xbf16, #tpu.memory_space<vmem>>, vector<1x4x8x8x128xbf16>
    %21 = vector.shape_cast %20 : vector<1x4x8x8x128xbf16> to vector<4x8x8x128xbf16>
    %c1_i32_20 = arith.constant 1 : i32
    %22 = arith.addi %1, %c1_i32_20 : i32
    %c0_21 = arith.constant 0 : index
    %23 = arith.index_cast %22 : i32 to index
    %c2_22 = arith.constant 2 : index
    %c0_23 = arith.constant 0 : index
    %c0_24 = arith.constant 0 : index
    %24 = vector.load %arg2[%c0_21, %23, %c2_22, %c0_23, %c0_24] : memref<1x6x10x8x128xbf16, #tpu.memory_space<vmem>>, vector<1x4x8x8x128xbf16>
    %25 = vector.shape_cast %24 : vector<1x4x8x8x128xbf16> to vector<4x8x8x128xbf16>
    %c2_i32 = arith.constant 2 : i32
    %26 = arith.addi %1, %c2_i32 : i32
    %c0_25 = arith.constant 0 : index
    %27 = arith.index_cast %26 : i32 to index
    %c0_26 = arith.constant 0 : index
    %c0_27 = arith.constant 0 : index
    %c0_28 = arith.constant 0 : index
    %28 = vector.load %arg2[%c0_25, %27, %c0_26, %c0_27, %c0_28] : memref<1x6x10x8x128xbf16, #tpu.memory_space<vmem>>, vector<1x4x8x8x128xbf16>
    %29 = vector.shape_cast %28 : vector<1x4x8x8x128xbf16> to vector<4x8x8x128xbf16>
    %c2_i32_29 = arith.constant 2 : i32
    %30 = arith.addi %1, %c2_i32_29 : i32
    %c0_30 = arith.constant 0 : index
    %31 = arith.index_cast %30 : i32 to index
    %c1_31 = arith.constant 1 : index
    %c0_32 = arith.constant 0 : index
    %c0_33 = arith.constant 0 : index
    %32 = vector.load %arg2[%c0_30, %31, %c1_31, %c0_32, %c0_33] : memref<1x6x10x8x128xbf16, #tpu.memory_space<vmem>>, vector<1x4x8x8x128xbf16>
    %33 = vector.shape_cast %32 : vector<1x4x8x8x128xbf16> to vector<4x8x8x128xbf16>
    %c2_i32_34 = arith.constant 2 : i32
    %34 = arith.addi %1, %c2_i32_34 : i32
    %c0_35 = arith.constant 0 : index
    %35 = arith.index_cast %34 : i32 to index
    %c2_36 = arith.constant 2 : index
    %c0_37 = arith.constant 0 : index
    %c0_38 = arith.constant 0 : index
    %36 = vector.load %arg2[%c0_35, %35, %c2_36, %c0_37, %c0_38] : memref<1x6x10x8x128xbf16, #tpu.memory_space<vmem>>, vector<1x4x8x8x128xbf16>
    %37 = vector.shape_cast %36 : vector<1x4x8x8x128xbf16> to vector<4x8x8x128xbf16>
    %38 = tpu.concatenate %5, %9, %13, %17, %21, %25, %29, %33, %37 in 3 : vector<4x8x8x128xbf16>, vector<4x8x8x128xbf16>, vector<4x8x8x128xbf16>, vector<4x8x8x128xbf16>, vector<4x8x8x128xbf16>, vector<4x8x8x128xbf16>, vector<4x8x8x128xbf16>, vector<4x8x8x128xbf16>, vector<4x8x8x128xbf16> -> vector<4x8x8x1152xbf16>
    %39 = vector.shape_cast %38 : vector<4x8x8x1152xbf16> to vector<256x1152xbf16>
    %c0_39 = arith.constant 0 : index
    %c0_40 = arith.constant 0 : index
    %40 = vector.load %arg3[%c0_39, %c0_40] : memref<1152x128xbf16, #tpu.memory_space<vmem>>, vector<1152x128xbf16>
    %cst = arith.constant dense<0.000000e+00> : vector<256x128xf32>
    %41 = tpu.matmul %39, %40, %cst {dimension_numbers = #tpu.dot_dimension_numbers<[1], [0], [0], [1], [0, 0, 1, 1], [], []>} : vector<256x1152xbf16>, vector<1152x128xbf16>, vector<256x128xf32> -> vector<256x128xf32>
    %c0_41 = arith.constant 0 : index
    %c0_42 = arith.constant 0 : index
    %42 = vector.load %arg4[%c0_41, %c0_42] : memref<1x128xf32, #tpu.memory_space<vmem>>, vector<1x128xf32>
    %43 = vector.broadcast %42 : vector<1x128xf32> to vector<256x128xf32>
    %44 = arith.addf %41, %43 : vector<256x128xf32>
    %c0_43 = arith.constant 0 : index
    %c0_44 = arith.constant 0 : index
    %45 = memref.load %arg5[%c0_43, %c0_44] : memref<1x1xf32, #tpu.memory_space<smem>>
    %cst_45 = arith.constant 0.000000e+00 : f32
    %46 = vector.broadcast %cst_45 : f32 to vector<256x128xf32>
    %47 = arith.cmpf ogt, %44, %46 : vector<256x128xf32>
    %48 = vector.broadcast %45 : f32 to vector<256x128xf32>
    %49 = arith.mulf %48, %44 : vector<256x128xf32>
    %50 = arith.select %47, %44, %49 : vector<256x128xi1>, vector<256x128xf32>
    %51 = vector.extract_strided_slice %50 {offsets = [0, 0], sizes = [256, 32], strides = [1, 1]} : vector<256x128xf32> to vector<256x32xf32>
    %52 = vector.shape_cast %51 : vector<256x32xf32> to vector<1x4x8x8x32xf32>
    %53 = arith.truncf %52 : vector<1x4x8x8x32xf32> to vector<1x4x8x8x32xbf16>
    %c0_46 = arith.constant 0 : index
    %c0_47 = arith.constant 0 : index
    %c0_48 = arith.constant 0 : index
    %c0_49 = arith.constant 0 : index
    %c0_50 = arith.constant 0 : index
    %54 = vector.load %arg6[%c0_46, %c0_47, %c0_48, %c0_49, %c0_50] : memref<1x4x8x8x32xbf16, #tpu.memory_space<vmem>>, vector<1x4x8x8x32xbf16>
    tpu.vector_store %arg6[%c0_46, %c0_47, %c0_48, %c0_49, %c0_50], %53 {strides = array<i32>} : memref<1x4x8x8x32xbf16, #tpu.memory_space<vmem>>, vector<1x4x8x8x32xbf16>,
    return
  }
  func.func @transform_0(%arg0: i32, %arg1: i32) -> (i32, i32, i32, i32, i32) {
    %c0_i32 = arith.constant 0 : i32
    %c0_i32_0 = arith.constant 0 : i32
    %c0_i32_1 = arith.constant 0 : i32
    %c0_i32_2 = arith.constant 0 : i32
    %c0_i32_3 = arith.constant 0 : i32
    return %arg0, %c0_i32, %c0_i32_0, %c0_i32_1, %c0_i32_2 : i32, i32, i32, i32, i32
  }
  func.func @transform_1(%arg0: i32, %arg1: i32) -> (i32, i32) {
    %c0_i32 = arith.constant 0 : i32
    %c0_i32_0 = arith.constant 0 : i32
    %c0_i32_1 = arith.constant 0 : i32
    return %c0_i32, %c0_i32_0 : i32, i32
  }
  func.func @transform_2(%arg0: i32, %arg1: i32) -> (i32, i32) {
    %c0_i32 = arith.constant 0 : i32
    %c0_i32_0 = arith.constant 0 : i32
    %c0_i32_1 = arith.constant 0 : i32
    return %c0_i32, %c0_i32_0 : i32, i32
  }
  func.func @transform_3(%arg0: i32, %arg1: i32) -> (i32, i32) {
    %c0_i32 = arith.constant 0 : i32
    %c0_i32_0 = arith.constant 0 : i32
    %c0_i32_1 = arith.constant 0 : i32
    return %c0_i32, %c0_i32_0 : i32, i32
  }
  func.func @transform_4(%arg0: i32, %arg1: i32) -> (i32, i32, i32, i32, i32) {
    %c0_i32 = arith.constant 0 : i32
    %c0_i32_0 = arith.constant 0 : i32
    %c0_i32_1 = arith.constant 0 : i32
    %c0_i32_2 = arith.constant 0 : i32
    return %arg0, %arg1, %c0_i32, %c0_i32_0, %c0_i32_1 : i32, i32, i32, i32, i32
  }
}

</mosaic_0001>

<llo_original>
// kernel: tpu_custom_call.1
$region0: #{tpu_custom_call.1}
  #allocation0 [shape = 'u32[]', space=smem, size = 0x4, offset = 0x4, fixed_abs, tag = 'smem constant byte address 0x4 - core index']
  #allocation1 [shape = 'u32[144,128]{1,0:T(1,128)}', space=vmem, size = 0x12000, scoped, tag = 'internal scratch']
  #allocation2 [shape = 'f32[1,1]{1,0:T(1,128)S(6)}', space=smem, size = 0x200, scoped, tag = 'scoped memory for tpu_custom_call.1']
  %s0 = inlined_call_operand.hbm [shape: bf16[2,6,10,8,128], index: 0, kind: input, shape index: {}]
  %s1 = inlined_call_operand.hbm [shape: bf16[1152,128], index: 1, kind: input, shape index: {}]
  %s2 = inlined_call_operand.vmem [shape: f32[1,128], index: 2, kind: input, shape index: {}]
  %s3 = inlined_call_operand.<no memory space> [shape: f32[1,1], index: 3, kind: input, shape index: {}]
  %s4 = inlined_call_operand.hbm [shape: bf16[2,4,8,8,32], index: 4, kind: output, shape index: {}]
  %s5 = sld [smem:[#allocation0]]
  $region57: #{tpu_custom_call.1} parent=0
    _
  %s7 = ssub.s32 1, %s5
  %s8 = scalar_select 0, %s7, %s5
  %9 = sst [smem:[#allocation2]] %s3
  $region1: #{tpu_custom_call.1} parent=0
    #allocation3 [shape = 'u8[245760]{0}', space=vmem, size = 0x3c000, scoped, tag = 'input window, operand 0']
    #allocation4 [shape = 's32[2]{0}', space=sflag, size = 0x8, scoped, tag = 'scoped memory for tpu_custom_call.1']
    #allocation5 [shape = 's32[2]{0}', space=sflag, size = 0x8, scoped, tag = 'scoped memory for tpu_custom_call.1']
    #allocation6 [shape = 'u8[294912]{0}', space=vmem, size = 0x48000, scoped, tag = 'input window, operand 1, single buffered']
    #allocation7 [shape = 's32[1]{0}', space=sflag, size = 0x4, scoped, tag = 'scoped memory for tpu_custom_call.1']
    #allocation8 [shape = 'u8[131072]{0}', space=vmem, size = 0x20000, scoped, tag = 'output window, operand 0']
    %10 = vsyncpa [#allocation4], 0
    %s11 = scalar_lea.sflag [#allocation4], 1
    %12 = vsyncpa %s11, 0
    %13 = vsyncpa [#allocation7], 0
    %14 = vsyncpa [#allocation5], 0
    %s15 = scalar_lea.sflag [#allocation5], 1
    %16 = vsyncpa %s15, 0
    loop: start=0, step=1, limit=4
    $region2: #{tpu_custom_call.1} parent=1 // loop_pre_header
      _
    $region3: #{tpu_custom_call.1} parent=1 // loop_header
      %s18 = sphi 0, %s22
      %p19 = scmp.ge.s32.totalorder %s18, 4
      %s25 = sphi 0, %s37
      %s26 = sphi 0, %s33
      %s27 = sphi 0, %s25
      %s28 = sphi 0, %s26
      %s29 = sphi 0, %s27
      %s30 = sphi 0, %s28
      %s40 = sphi 0, %s42
      %s43 = sphi 0, %s40
      %s44 = sphi 0, %s43
      %s60 = sphi 0, %s44
      %s64 = sphi 0, %s64
      %s66 = sphi 0, %s64
      %s67 = sphi 0, %s66
      %s81 = sphi 0, %s67
      %s85 = sphi 0, %s85
      %s87 = sphi 0, %s85
      %s88 = sphi 0, %s87
      %s102 = sphi 0, %s88
      %s106 = sphi 0, %s106
      %s108 = sphi 0, %s106
      %s109 = sphi 0, %s108
      %s123 = sphi 0, %s109
      %s131 = sphi 0, %s133
      %s134 = sphi 0, %s131
      %s135 = sphi 0, %s134
      %s151 = sphi 0, %s135
    $region4: #{tpu_custom_call.1} parent=1 // loop_header_branch
      %21 = sbr.rel (%p19) target = $region8
    $region5: #{tpu_custom_call.1} parent=1 // loop_body
      %s23 = ssub.s32 %s18, 1
      %s24 = ssub.s32 %s18, 2
      %s31 = sadd.s32 1, %s26
      %p32 = scmp.ge.s32.totalorder %s31, 1
      %s33 = scalar_select %p32, 0, %s31
      %s34 = sadd.s32 1, %s25
      %s35 = scalar_select %p32, %s34, %s25
      %p36 = scmp.ge.s32.totalorder %s35, 2
      %s37 = scalar_select %p36, 0, %s35
      %s38 = ssub.s32 %s25, %s37
      %p39 = scmp.eq.s32.totalorder %s38, 0
      %s41 = sadd.s32 %s40, 1
      %s42 = scalar_select %p39, %s40, %s41
      %p45 = pneg %p39
      %p46 = scmp.eq.s32.totalorder %s18, 1
      %p47 = por %p45, %p46
      %p48 = scmp.ne.s32.totalorder %s40, %s43
      %p49 = scmp.eq.s32.totalorder %s18, 0
      %p50 = por %p48, %p49
      %p51 = scmp.ne.s32.totalorder %s40, %s43
      %p52 = scmp.eq.s32.totalorder %s23, 1
      %p53 = por %p51, %p52
      %p54 = scmp.ne.s32.totalorder %s43, %s44
      %p55 = scmp.eq.s32.totalorder %s23, 0
      %p56 = por %p54, %p55
      %p57 = scmp.ne.s32.totalorder %s43, %s44
      %p58 = scmp.eq.s32.totalorder %s24, 1
      %p59 = por %p57, %p58
      %p61 = scmp.ne.s32.totalorder %s44, %s60
      %p62 = scmp.eq.s32.totalorder %s24, 0
      %p63 = por %p61, %p62
      %s65 = sadd.s32 %s64, 1
      %p68 = scmp.eq.s32.totalorder %s18, 1
      %p69 = scmp.ne.s32.totalorder %s64, %s66
      %p70 = scmp.eq.s32.totalorder %s18, 0
      %p71 = por %p69, %p70
      %p72 = scmp.ne.s32.totalorder %s64, %s66
      %p73 = scmp.eq.s32.totalorder %s23, 1
      %p74 = por %p72, %p73
      %p75 = scmp.ne.s32.totalorder %s66, %s67
      %p76 = scmp.eq.s32.totalorder %s23, 0
      %p77 = por %p75, %p76
      %p78 = scmp.ne.s32.totalorder %s66, %s67
      %p79 = scmp.eq.s32.totalorder %s24, 1
      %p80 = por %p78, %p79
      %p82 = scmp.ne.s32.totalorder %s67, %s81
      %p83 = scmp.eq.s32.totalorder %s24, 0
      %p84 = por %p82, %p83
      %s86 = sadd.s32 %s85, 1
      %p89 = scmp.eq.s32.totalorder %s18, 1
      %p90 = scmp.ne.s32.totalorder %s85, %s87
      %p91 = scmp.eq.s32.totalorder %s18, 0
      %p92 = por %p90, %p91
      %p93 = scmp.ne.s32.totalorder %s85, %s87
      %p94 = scmp.eq.s32.totalorder %s23, 1
      %p95 = por %p93, %p94
      %p96 = scmp.ne.s32.totalorder %s87, %s88
      %p97 = scmp.eq.s32.totalorder %s23, 0
      %p98 = por %p96, %p97
      %p99 = scmp.ne.s32.totalorder %s87, %s88
      %p100 = scmp.eq.s32.totalorder %s24, 1
      %p101 = por %p99, %p100
      %p103 = scmp.ne.s32.totalorder %s88, %s102
      %p104 = scmp.eq.s32.totalorder %s24, 0
      %p105 = por %p103, %p104
      %s107 = sadd.s32 %s106, 1
      %p110 = scmp.eq.s32.totalorder %s18, 1
      %p111 = scmp.ne.s32.totalorder %s106, %s108
      %p112 = scmp.eq.s32.totalorder %s18, 0
      %p113 = por %p111, %p112
      %p114 = scmp.ne.s32.totalorder %s106, %s108
      %p115 = scmp.eq.s32.totalorder %s23, 1
      %p116 = por %p114, %p115
      %p117 = scmp.ne.s32.totalorder %s108, %s109
      %p118 = scmp.eq.s32.totalorder %s23, 0
      %p119 = por %p117, %p118
      %p120 = scmp.ne.s32.totalorder %s108, %s109
      %p121 = scmp.eq.s32.totalorder %s24, 1
      %p122 = por %p120, %p121
      %p124 = scmp.ne.s32.totalorder %s109, %s123
      %p125 = scmp.eq.s32.totalorder %s24, 0
      %p126 = por %p124, %p125
      %s127 = ssub.s32 %s25, %s37
      %s128 = ssub.s32 %s26, %s33
      %s129 = sor.u32 %s127, %s128
      %p130 = scmp.eq.s32.totalorder %s129, 0
      %s132 = sadd.s32 %s131, 1
      %s133 = scalar_select %p130, %s131, %s132
      %p136 = pneg %p130
      %p137 = scmp.eq.s32.totalorder %s18, 1
      %p138 = por %p136, %p137
      %p139 = scmp.ne.s32.totalorder %s131, %s134
      %p140 = scmp.eq.s32.totalorder %s18, 0
      %p141 = por %p139, %p140
      %p142 = scmp.ne.s32.totalorder %s131, %s134
      %p143 = scmp.eq.s32.totalorder %s23, 1
      %p144 = por %p142, %p143
      %p145 = scmp.ne.s32.totalorder %s134, %s135
      %p146 = scmp.eq.s32.totalorder %s23, 0
      %p147 = por %p145, %p146
      %p148 = scmp.ne.s32.totalorder %s134, %s135
      %p149 = scmp.eq.s32.totalorder %s24, 1
      %p150 = por %p148, %p149
      %p152 = scmp.ne.s32.totalorder %s135, %s151
      %p153 = scmp.eq.s32.totalorder %s24, 0
      %p154 = por %p152, %p153
      %p155 = scmp.le.s32.totalorder 1, %s18
      %p156 = scmp.lt.s32.totalorder %s18, 3
      %p157 = pnand %p155, %p156
      %p158 = pneg %p157
      // Predicated region
      $region9: #{tpu_custom_call.1} parent=5 // pred_check
        _
      $region10: #{tpu_custom_call.1} parent=5 // pred_check_branch
        %160 = sbr.rel (%p157) target = $region12
      $region11: #{tpu_custom_call.1} parent=5 // pred_region
        %s161 = ssub.s32 %s18, 1
        // Predicated region
        $region13: #{tpu_custom_call.1} parent=11 // pred_check
          %p162 = pneg %p77
        $region14: #{tpu_custom_call.1} parent=11 // pred_check_branch
          %164 = sbr.rel (%p162) target = $region16
        $region15: #{tpu_custom_call.1} parent=11 // pred_region
          %s166 = ssub.s32 9216, 9216
          %167 = vsyncadd [#allocation7], %s166
          %s168 = sshll.u32 [#allocation6], 4
          %s169 = int_to_ptr.vmem [resolvable:$true] %s168
          %174 = dma.hbm_to_vmem [thread:$0]  %s1, 9216, %s169, [#allocation7], 64, 64, 4
        $region16: #{tpu_custom_call.1} parent=11 // pred_fallthru
          _
        // Predicated region
        $region17: #{tpu_custom_call.1} parent=11 // pred_check
          %p175 = pneg %p98
        $region18: #{tpu_custom_call.1} parent=11 // pred_check_branch
          %177 = sbr.rel (%p175) target = $region20
        $region19: #{tpu_custom_call.1} parent=11 // pred_region
          _
        $region20: #{tpu_custom_call.1} parent=11 // pred_fallthru
          _
        // Predicated region
        $region21: #{tpu_custom_call.1} parent=11 // pred_check
          %p178 = pneg %p119
        $region22: #{tpu_custom_call.1} parent=11 // pred_check_branch
          %180 = sbr.rel (%p178) target = $region24
        $region23: #{tpu_custom_call.1} parent=11 // pred_region
          _
        $region24: #{tpu_custom_call.1} parent=11 // pred_fallthru
          _
      $region12: #{tpu_custom_call.1} parent=5 // pred_fallthru
        _
      %p181 = scmp.lt.s32.totalorder %s18, 2
      // Predicated region
      $region25: #{tpu_custom_call.1} parent=5 // pred_check
        %p182 = pneg %p181
      $region26: #{tpu_custom_call.1} parent=5 // pred_check_branch
        %184 = sbr.rel (%p182) target = $region28
      $region27: #{tpu_custom_call.1} parent=5 // pred_region
        // Predicated region
        $region29: #{tpu_custom_call.1} parent=27 // pred_check
          %p185 = pneg %p50
        $region30: #{tpu_custom_call.1} parent=27 // pred_check_branch
          %187 = sbr.rel (%p185) target = $region32
        $region31: #{tpu_custom_call.1} parent=27 // pred_region
          %s188 = sand.u32 %s40, 1
          %s189 = scalar_lea.sflag [#allocation4], %s188
          %s190 = sand.u32 %s40, 1
          %s191 = smul.addr %s190, 240
          %s192 = scalar_lea.vmem [#allocation3], %s191
          %s194 = ssub.s32 3840, 3840
          %195 = vsyncadd %s189, %s194
          %s196 = smul.addr %s25, 60
          %s197 = smul.addr %s196, 64
          %s198 = scalar_lea.hbm %s0, %s197
          %s199 = sshll.u32 %s192, 4
          %s200 = int_to_ptr.vmem [resolvable:$true] %s199
          %205 = dma.hbm_to_vmem [thread:$0]  %s198, 3840, %s200, %s189, 64, 64, 4
        $region32: #{tpu_custom_call.1} parent=27 // pred_fallthru
          _
      $region28: #{tpu_custom_call.1} parent=5 // pred_fallthru
        _
      %p206 = scmp.le.s32.totalorder 1, %s18
      %p207 = scmp.lt.s32.totalorder %s18, 3
      %p208 = pnand %p206, %p207
      %p209 = pneg %p208
      // Predicated region
      $region33: #{tpu_custom_call.1} parent=5 // pred_check
        _
      $region34: #{tpu_custom_call.1} parent=5 // pred_check_branch
        %211 = sbr.rel (%p208) target = $region36
      $region35: #{tpu_custom_call.1} parent=5 // pred_region
        %s212 = ssub.s32 %s18, 1
        %s213 = sand.u32 %s43, 1
        %s214 = scalar_lea.sflag [#allocation4], %s213
        %s215 = sand.u32 %s43, 1
        %s216 = smul.addr %s215, 240
        %s217 = scalar_lea.vmem [#allocation3], %s216
        // Predicated region
        $region37: #{tpu_custom_call.1} parent=35 // pred_check
          %p218 = pneg %p56
        $region38: #{tpu_custom_call.1} parent=35 // pred_check_branch
          %220 = sbr.rel (%p218) target = $region40
        $region39: #{tpu_custom_call.1} parent=35 // pred_region
          %221 = dma.done %s214, 3840
        $region40: #{tpu_custom_call.1} parent=35 // pred_fallthru
          _
        // Predicated region
        $region41: #{tpu_custom_call.1} parent=35 // pred_check
          %p222 = pneg %p77
        $region42: #{tpu_custom_call.1} parent=35 // pred_check_branch
          %224 = sbr.rel (%p222) target = $region44
        $region43: #{tpu_custom_call.1} parent=35 // pred_region
          %225 = dma.done [#allocation7], 9216
        $region44: #{tpu_custom_call.1} parent=35 // pred_fallthru
          _
        %s226 = sand.u32 %s43, 1
        %s227 = scalar_lea.sflag [#allocation4], %s226
        %s228 = sand.u32 %s43, 1
        %s229 = smul.addr %s228, 240
        %s230 = scalar_lea.vmem [#allocation3], %s229
        %p231 = pneg %p56
        %p232 = pneg %p53
        %p233 = pneg %p77
        %p234 = pneg %p74
        %p235 = pneg %p98
        %p236 = pneg %p95
        %p237 = pneg %p119
        %p238 = pneg %p116
        %p239 = pneg %p147
        %p240 = pneg %p144
        %s241 = sand.u32 %s134, 1
        %s242 = scalar_lea.sflag [#allocation5], %s241
        %s243 = sand.u32 %s134, 1
        %s244 = smul.addr %s243, 128
        %s245 = scalar_lea.vmem [#allocation8], %s244
        %s246 = smul.u32 4, %s28
        %s248 = smul.u32 %s28, 4
        %s249 = smul.u32 %s248, 10
        %s250 = smul.addr %s249, 4
        %s251 = scalar_lea.vmem %s217, %s250 [#allocation3]
        %v252 = vld [vmem:[%s251] sm:$0xf]
        %v253 = vld [vmem:[%s251 + $0x4] sm:$0xf]
        %v254 = vld [vmem:[%s251 + $0x8] sm:$0xf]
        %v255 = vld [vmem:[%s251 + $0xc] sm:$0xf]
        %v256 = vld [vmem:[%s251 + $0x10] sm:$0xf]
        %v257 = vld [vmem:[%s251 + $0x14] sm:$0xf]
        %v258 = vld [vmem:[%s251 + $0x18] sm:$0xf]
        %v259 = vld [vmem:[%s251 + $0x1c] sm:$0xf]
        %v260 = vld [vmem:[%s251 + $0x28] sm:$0xf]
        %v261 = vld [vmem:[%s251 + $0x2c] sm:$0xf]
        %v262 = vld [vmem:[%s251 + $0x30] sm:$0xf]
        %v263 = vld [vmem:[%s251 + $0x34] sm:$0xf]
        %v264 = vld [vmem:[%s251 + $0x38] sm:$0xf]
        %v265 = vld [vmem:[%s251 + $0x3c] sm:$0xf]
        %v266 = vld [vmem:[%s251 + $0x40] sm:$0xf]
        %v267 = vld [vmem:[%s251 + $0x44] sm:$0xf]
        %v268 = vld [vmem:[%s251 + $0x50] sm:$0xf]
        %v269 = vld [vmem:[%s251 + $0x54] sm:$0xf]
        %v270 = vld [vmem:[%s251 + $0x58] sm:$0xf]
        %v271 = vld [vmem:[%s251 + $0x5c] sm:$0xf]
        %v272 = vld [vmem:[%s251 + $0x60] sm:$0xf]
        %v273 = vld [vmem:[%s251 + $0x64] sm:$0xf]
        %v274 = vld [vmem:[%s251 + $0x68] sm:$0xf]
        %v275 = vld [vmem:[%s251 + $0x6c] sm:$0xf]
        %v276 = vld [vmem:[%s251 + $0x78] sm:$0xf]
        %v277 = vld [vmem:[%s251 + $0x7c] sm:$0xf]
        %v278 = vld [vmem:[%s251 + $0x80] sm:$0xf]
        %v279 = vld [vmem:[%s251 + $0x84] sm:$0xf]
        %v280 = vld [vmem:[%s251 + $0x88] sm:$0xf]
        %v281 = vld [vmem:[%s251 + $0x8c] sm:$0xf]
        %v282 = vld [vmem:[%s251 + $0x90] sm:$0xf]
        %v283 = vld [vmem:[%s251 + $0x94] sm:$0xf]
        %s284 = sadd.s32 1, %s249
        %s285 = smul.addr %s284, 4
        %s286 = scalar_lea.vmem %s217, %s285 [#allocation3]
        %v287 = vld [vmem:[%s286] sm:$0xf]
        %v288 = vld [vmem:[%s286 + $0x4] sm:$0xf]
        %v289 = vld [vmem:[%s286 + $0x8] sm:$0xf]
        %v290 = vld [vmem:[%s286 + $0xc] sm:$0xf]
        %v291 = vld [vmem:[%s286 + $0x10] sm:$0xf]
        %v292 = vld [vmem:[%s286 + $0x14] sm:$0xf]
        %v293 = vld [vmem:[%s286 + $0x18] sm:$0xf]
        %v294 = vld [vmem:[%s286 + $0x1c] sm:$0xf]
        %v295 = vld [vmem:[%s286 + $0x28] sm:$0xf]
        %v296 = vld [vmem:[%s286 + $0x2c] sm:$0xf]
        %v297 = vld [vmem:[%s286 + $0x30] sm:$0xf]
        %v298 = vld [vmem:[%s286 + $0x34] sm:$0xf]
        %v299 = vld [vmem:[%s286 + $0x38] sm:$0xf]
        %v300 = vld [vmem:[%s286 + $0x3c] sm:$0xf]
        %v301 = vld [vmem:[%s286 + $0x40] sm:$0xf]
        %v302 = vld [vmem:[%s286 + $0x44] sm:$0xf]
        %v303 = vld [vmem:[%s286 + $0x50] sm:$0xf]
        %v304 = vld [vmem:[%s286 + $0x54] sm:$0xf]
        %v305 = vld [vmem:[%s286 + $0x58] sm:$0xf]
        %v306 = vld [vmem:[%s286 + $0x5c] sm:$0xf]
        %v307 = vld [vmem:[%s286 + $0x60] sm:$0xf]
        %v308 = vld [vmem:[%s286 + $0x64] sm:$0xf]
        %v309 = vld [vmem:[%s286 + $0x68] sm:$0xf]
        %v310 = vld [vmem:[%s286 + $0x6c] sm:$0xf]
        %v311 = vld [vmem:[%s286 + $0x78] sm:$0xf]
        %v312 = vld [vmem:[%s286 + $0x7c] sm:$0xf]
        %v313 = vld [vmem:[%s286 + $0x80] sm:$0xf]
        %v314 = vld [vmem:[%s286 + $0x84] sm:$0xf]
        %v315 = vld [vmem:[%s286 + $0x88] sm:$0xf]
        %v316 = vld [vmem:[%s286 + $0x8c] sm:$0xf]
        %v317 = vld [vmem:[%s286 + $0x90] sm:$0xf]
        %v318 = vld [vmem:[%s286 + $0x94] sm:$0xf]
        %s319 = sadd.s32 2, %s249
        %s320 = smul.addr %s319, 4
        %s321 = scalar_lea.vmem %s217, %s320 [#allocation3]
        %v322 = vld [vmem:[%s321] sm:$0xf]
        %v323 = vld [vmem:[%s321 + $0x4] sm:$0xf]
        %v324 = vld [vmem:[%s321 + $0x8] sm:$0xf]
        %v325 = vld [vmem:[%s321 + $0xc] sm:$0xf]
        %v326 = vld [vmem:[%s321 + $0x10] sm:$0xf]
        %v327 = vld [vmem:[%s321 + $0x14] sm:$0xf]
        %v328 = vld [vmem:[%s321 + $0x18] sm:$0xf]
        %v329 = vld [vmem:[%s321 + $0x1c] sm:$0xf]
        %v330 = vld [vmem:[%s321 + $0x28] sm:$0xf]
        %v331 = vld [vmem:[%s321 + $0x2c] sm:$0xf]
        %v332 = vld [vmem:[%s321 + $0x30] sm:$0xf]
        %v333 = vld [vmem:[%s321 + $0x34] sm:$0xf]
        %v334 = vld [vmem:[%s321 + $0x38] sm:$0xf]
        %v335 = vld [vmem:[%s321 + $0x3c] sm:$0xf]
        %v336 = vld [vmem:[%s321 + $0x40] sm:$0xf]
        %v337 = vld [vmem:[%s321 + $0x44] sm:$0xf]
        %v338 = vld [vmem:[%s321 + $0x50] sm:$0xf]
        %v339 = vld [vmem:[%s321 + $0x54] sm:$0xf]
        %v340 = vld [vmem:[%s321 + $0x58] sm:$0xf]
        %v341 = vld [vmem:[%s321 + $0x5c] sm:$0xf]
        %v342 = vld [vmem:[%s321 + $0x60] sm:$0xf]
        %v343 = vld [vmem:[%s321 + $0x64] sm:$0xf]
        %v344 = vld [vmem:[%s321 + $0x68] sm:$0xf]
        %v345 = vld [vmem:[%s321 + $0x6c] sm:$0xf]
        %v346 = vld [vmem:[%s321 + $0x78] sm:$0xf]
        %v347 = vld [vmem:[%s321 + $0x7c] sm:$0xf]
        %v348 = vld [vmem:[%s321 + $0x80] sm:$0xf]
        %v349 = vld [vmem:[%s321 + $0x84] sm:$0xf]
        %v350 = vld [vmem:[%s321 + $0x88] sm:$0xf]
        %v351 = vld [vmem:[%s321 + $0x8c] sm:$0xf]
        %v352 = vld [vmem:[%s321 + $0x90] sm:$0xf]
        %v353 = vld [vmem:[%s321 + $0x94] sm:$0xf]
        %s354 = sadd.s32 %s248, 1
        %s355 = smul.u32 %s354, 10
        %s356 = smul.addr %s355, 4
        %s357 = scalar_lea.vmem %s217, %s356 [#allocation3]
        %v358 = vld [vmem:[%s357] sm:$0xf]
        %v359 = vld [vmem:[%s357 + $0x4] sm:$0xf]
        %v360 = vld [vmem:[%s357 + $0x8] sm:$0xf]
        %v361 = vld [vmem:[%s357 + $0xc] sm:$0xf]
        %v362 = vld [vmem:[%s357 + $0x10] sm:$0xf]
        %v363 = vld [vmem:[%s357 + $0x14] sm:$0xf]
        %v364 = vld [vmem:[%s357 + $0x18] sm:$0xf]
        %v365 = vld [vmem:[%s357 + $0x1c] sm:$0xf]
        %v366 = vld [vmem:[%s357 + $0x28] sm:$0xf]
        %v367 = vld [vmem:[%s357 + $0x2c] sm:$0xf]
        %v368 = vld [vmem:[%s357 + $0x30] sm:$0xf]
        %v369 = vld [vmem:[%s357 + $0x34] sm:$0xf]
        %v370 = vld [vmem:[%s357 + $0x38] sm:$0xf]
        %v371 = vld [vmem:[%s357 + $0x3c] sm:$0xf]
        %v372 = vld [vmem:[%s357 + $0x40] sm:$0xf]
        %v373 = vld [vmem:[%s357 + $0x44] sm:$0xf]
        %v374 = vld [vmem:[%s357 + $0x50] sm:$0xf]
        %v375 = vld [vmem:[%s357 + $0x54] sm:$0xf]
        %v376 = vld [vmem:[%s357 + $0x58] sm:$0xf]
        %v377 = vld [vmem:[%s357 + $0x5c] sm:$0xf]
        %v378 = vld [vmem:[%s357 + $0x60] sm:$0xf]
        %v379 = vld [vmem:[%s357 + $0x64] sm:$0xf]
        %v380 = vld [vmem:[%s357 + $0x68] sm:$0xf]
        %v381 = vld [vmem:[%s357 + $0x6c] sm:$0xf]
        %v382 = vld [vmem:[%s357 + $0x78] sm:$0xf]
        %v383 = vld [vmem:[%s357 + $0x7c] sm:$0xf]
        %v384 = vld [vmem:[%s357 + $0x80] sm:$0xf]
        %v385 = vld [vmem:[%s357 + $0x84] sm:$0xf]
        %v386 = vld [vmem:[%s357 + $0x88] sm:$0xf]
        %v387 = vld [vmem:[%s357 + $0x8c] sm:$0xf]
        %v388 = vld [vmem:[%s357 + $0x90] sm:$0xf]
        %v389 = vld [vmem:[%s357 + $0x94] sm:$0xf]
        %s390 = sadd.s32 1, %s355
        %s391 = smul.addr %s390, 4
        %s392 = scalar_lea.vmem %s217, %s391 [#allocation3]
        %v393 = vld [vmem:[%s392] sm:$0xf]
        %v394 = vld [vmem:[%s392 + $0x4] sm:$0xf]
        %v395 = vld [vmem:[%s392 + $0x8] sm:$0xf]
        %v396 = vld [vmem:[%s392 + $0xc] sm:$0xf]
        %v397 = vld [vmem:[%s392 + $0x10] sm:$0xf]
        %v398 = vld [vmem:[%s392 + $0x14] sm:$0xf]
        %v399 = vld [vmem:[%s392 + $0x18] sm:$0xf]
        %v400 = vld [vmem:[%s392 + $0x1c] sm:$0xf]
        %v401 = vld [vmem:[%s392 + $0x28] sm:$0xf]
        %v402 = vld [vmem:[%s392 + $0x2c] sm:$0xf]
        %v403 = vld [vmem:[%s392 + $0x30] sm:$0xf]
        %v404 = vld [vmem:[%s392 + $0x34] sm:$0xf]
        %v405 = vld [vmem:[%s392 + $0x38] sm:$0xf]
        %v406 = vld [vmem:[%s392 + $0x3c] sm:$0xf]
        %v407 = vld [vmem:[%s392 + $0x40] sm:$0xf]
        %v408 = vld [vmem:[%s392 + $0x44] sm:$0xf]
        %v409 = vld [vmem:[%s392 + $0x50] sm:$0xf]
        %v410 = vld [vmem:[%s392 + $0x54] sm:$0xf]
        %v411 = vld [vmem:[%s392 + $0x58] sm:$0xf]
        %v412 = vld [vmem:[%s392 + $0x5c] sm:$0xf]
        %v413 = vld [vmem:[%s392 + $0x60] sm:$0xf]
        %v414 = vld [vmem:[%s392 + $0x64] sm:$0xf]
        %v415 = vld [vmem:[%s392 + $0x68] sm:$0xf]
        %v416 = vld [vmem:[%s392 + $0x6c] sm:$0xf]
        %v417 = vld [vmem:[%s392 + $0x78] sm:$0xf]
        %v418 = vld [vmem:[%s392 + $0x7c] sm:$0xf]
        %v419 = vld [vmem:[%s392 + $0x80] sm:$0xf]
        %v420 = vld [vmem:[%s392 + $0x84] sm:$0xf]
        %v421 = vld [vmem:[%s392 + $0x88] sm:$0xf]
        %v422 = vld [vmem:[%s392 + $0x8c] sm:$0xf]
        %v423 = vld [vmem:[%s392 + $0x90] sm:$0xf]
        %v424 = vld [vmem:[%s392 + $0x94] sm:$0xf]
        %s425 = sadd.s32 2, %s355
        %s426 = smul.addr %s425, 4
        %s427 = scalar_lea.vmem %s217, %s426 [#allocation3]
        %v428 = vld [vmem:[%s427] sm:$0xf]
        %v429 = vld [vmem:[%s427 + $0x4] sm:$0xf]
        %v430 = vld [vmem:[%s427 + $0x8] sm:$0xf]
        %v431 = vld [vmem:[%s427 + $0xc] sm:$0xf]
        %v432 = vld [vmem:[%s427 + $0x10] sm:$0xf]
        %v433 = vld [vmem:[%s427 + $0x14] sm:$0xf]
        %v434 = vld [vmem:[%s427 + $0x18] sm:$0xf]
        %v435 = vld [vmem:[%s427 + $0x1c] sm:$0xf]
        %v436 = vld [vmem:[%s427 + $0x28] sm:$0xf]
        %v437 = vld [vmem:[%s427 + $0x2c] sm:$0xf]
        %v438 = vld [vmem:[%s427 + $0x30] sm:$0xf]
        %v439 = vld [vmem:[%s427 + $0x34] sm:$0xf]
        %v440 = vld [vmem:[%s427 + $0x38] sm:$0xf]
        %v441 = vld [vmem:[%s427 + $0x3c] sm:$0xf]
        %v442 = vld [vmem:[%s427 + $0x40] sm:$0xf]
        %v443 = vld [vmem:[%s427 + $0x44] sm:$0xf]
        %v444 = vld [vmem:[%s427 + $0x50] sm:$0xf]
        %v445 = vld [vmem:[%s427 + $0x54] sm:$0xf]
        %v446 = vld [vmem:[%s427 + $0x58] sm:$0xf]
        %v447 = vld [vmem:[%s427 + $0x5c] sm:$0xf]
        %v448 = vld [vmem:[%s427 + $0x60] sm:$0xf]
        %v449 = vld [vmem:[%s427 + $0x64] sm:$0xf]
        %v450 = vld [vmem:[%s427 + $0x68] sm:$0xf]
        %v451 = vld [vmem:[%s427 + $0x6c] sm:$0xf]
        %v452 = vld [vmem:[%s427 + $0x78] sm:$0xf]
        %v453 = vld [vmem:[%s427 + $0x7c] sm:$0xf]
        %v454 = vld [vmem:[%s427 + $0x80] sm:$0xf]
        %v455 = vld [vmem:[%s427 + $0x84] sm:$0xf]
        %v456 = vld [vmem:[%s427 + $0x88] sm:$0xf]
        %v457 = vld [vmem:[%s427 + $0x8c] sm:$0xf]
        %v458 = vld [vmem:[%s427 + $0x90] sm:$0xf]
        %v459 = vld [vmem:[%s427 + $0x94] sm:$0xf]
        %s460 = sadd.s32 %s248, 2
        %s461 = smul.u32 %s460, 10
        %s462 = smul.addr %s461, 4
        %s463 = scalar_lea.vmem %s217, %s462 [#allocation3]
        %v464 = vld [vmem:[%s463] sm:$0xf]
        %v465 = vld [vmem:[%s463 + $0x4] sm:$0xf]
        %v466 = vld [vmem:[%s463 + $0x8] sm:$0xf]
        %v467 = vld [vmem:[%s463 + $0xc] sm:$0xf]
        %v468 = vld [vmem:[%s463 + $0x10] sm:$0xf]
        %v469 = vld [vmem:[%s463 + $0x14] sm:$0xf]
        %v470 = vld [vmem:[%s463 + $0x18] sm:$0xf]
        %v471 = vld [vmem:[%s463 + $0x1c] sm:$0xf]
        %v472 = vld [vmem:[%s463 + $0x28] sm:$0xf]
        %v473 = vld [vmem:[%s463 + $0x2c] sm:$0xf]
        %v474 = vld [vmem:[%s463 + $0x30] sm:$0xf]
        %v475 = vld [vmem:[%s463 + $0x34] sm:$0xf]
        %v476 = vld [vmem:[%s463 + $0x38] sm:$0xf]
        %v477 = vld [vmem:[%s463 + $0x3c] sm:$0xf]
        %v478 = vld [vmem:[%s463 + $0x40] sm:$0xf]
        %v479 = vld [vmem:[%s463 + $0x44] sm:$0xf]
        %v480 = vld [vmem:[%s463 + $0x50] sm:$0xf]
        %v481 = vld [vmem:[%s463 + $0x54] sm:$0xf]
        %v482 = vld [vmem:[%s463 + $0x58] sm:$0xf]
        %v483 = vld [vmem:[%s463 + $0x5c] sm:$0xf]
        %v484 = vld [vmem:[%s463 + $0x60] sm:$0xf]
        %v485 = vld [vmem:[%s463 + $0x64] sm:$0xf]
        %v486 = vld [vmem:[%s463 + $0x68] sm:$0xf]
        %v487 = vld [vmem:[%s463 + $0x6c] sm:$0xf]
        %v488 = vld [vmem:[%s463 + $0x78] sm:$0xf]
        %v489 = vld [vmem:[%s463 + $0x7c] sm:$0xf]
        %v490 = vld [vmem:[%s463 + $0x80] sm:$0xf]
        %v491 = vld [vmem:[%s463 + $0x84] sm:$0xf]
        %v492 = vld [vmem:[%s463 + $0x88] sm:$0xf]
        %v493 = vld [vmem:[%s463 + $0x8c] sm:$0xf]
        %v494 = vld [vmem:[%s463 + $0x90] sm:$0xf]
        %v495 = vld [vmem:[%s463 + $0x94] sm:$0xf]
        %s496 = sadd.s32 1, %s461
        %s497 = smul.addr %s496, 4
        %s498 = scalar_lea.vmem %s217, %s497 [#allocation3]
        %v499 = vld [vmem:[%s498] sm:$0xf]
        %v500 = vld [vmem:[%s498 + $0x4] sm:$0xf]
        %v501 = vld [vmem:[%s498 + $0x8] sm:$0xf]
        %v502 = vld [vmem:[%s498 + $0xc] sm:$0xf]
        %v503 = vld [vmem:[%s498 + $0x10] sm:$0xf]
        %v504 = vld [vmem:[%s498 + $0x14] sm:$0xf]
        %v505 = vld [vmem:[%s498 + $0x18] sm:$0xf]
        %v506 = vld [vmem:[%s498 + $0x1c] sm:$0xf]
        %v507 = vld [vmem:[%s498 + $0x28] sm:$0xf]
        %v508 = vld [vmem:[%s498 + $0x2c] sm:$0xf]
        %v509 = vld [vmem:[%s498 + $0x30] sm:$0xf]
        %v510 = vld [vmem:[%s498 + $0x34] sm:$0xf]
        %v511 = vld [vmem:[%s498 + $0x38] sm:$0xf]
        %v512 = vld [vmem:[%s498 + $0x3c] sm:$0xf]
        %v513 = vld [vmem:[%s498 + $0x40] sm:$0xf]
        %v514 = vld [vmem:[%s498 + $0x44] sm:$0xf]
        %v515 = vld [vmem:[%s498 + $0x50] sm:$0xf]
        %v516 = vld [vmem:[%s498 + $0x54] sm:$0xf]
        %v517 = vld [vmem:[%s498 + $0x58] sm:$0xf]
        %v518 = vld [vmem:[%s498 + $0x5c] sm:$0xf]
        %v519 = vld [vmem:[%s498 + $0x60] sm:$0xf]
        %v520 = vld [vmem:[%s498 + $0x64] sm:$0xf]
        %v521 = vld [vmem:[%s498 + $0x68] sm:$0xf]
        %v522 = vld [vmem:[%s498 + $0x6c] sm:$0xf]
        %v523 = vld [vmem:[%s498 + $0x78] sm:$0xf]
        %v524 = vld [vmem:[%s498 + $0x7c] sm:$0xf]
        %v525 = vld [vmem:[%s498 + $0x80] sm:$0xf]
        %v526 = vld [vmem:[%s498 + $0x84] sm:$0xf]
        %v527 = vld [vmem:[%s498 + $0x88] sm:$0xf]
        %v528 = vld [vmem:[%s498 + $0x8c] sm:$0xf]
        %v529 = vld [vmem:[%s498 + $0x90] sm:$0xf]
        %v530 = vld [vmem:[%s498 + $0x94] sm:$0xf]
        %s531 = sadd.s32 2, %s461
        %s532 = smul.addr %s531, 4
        %s533 = scalar_lea.vmem %s217, %s532 [#allocation3]
        %v534 = vld [vmem:[%s533] sm:$0xf]
        %v535 = vld [vmem:[%s533 + $0x4] sm:$0xf]
        %v536 = vld [vmem:[%s533 + $0x8] sm:$0xf]
        %v537 = vld [vmem:[%s533 + $0xc] sm:$0xf]
        %v538 = vld [vmem:[%s533 + $0x10] sm:$0xf]
        %v539 = vld [vmem:[%s533 + $0x14] sm:$0xf]
        %v540 = vld [vmem:[%s533 + $0x18] sm:$0xf]
        %v541 = vld [vmem:[%s533 + $0x1c] sm:$0xf]
        %v542 = vld [vmem:[%s533 + $0x28] sm:$0xf]
        %v543 = vld [vmem:[%s533 + $0x2c] sm:$0xf]
        %v544 = vld [vmem:[%s533 + $0x30] sm:$0xf]
        %v545 = vld [vmem:[%s533 + $0x34] sm:$0xf]
        %v546 = vld [vmem:[%s533 + $0x38] sm:$0xf]
        %v547 = vld [vmem:[%s533 + $0x3c] sm:$0xf]
        %v548 = vld [vmem:[%s533 + $0x40] sm:$0xf]
        %v549 = vld [vmem:[%s533 + $0x44] sm:$0xf]
        %v550 = vld [vmem:[%s533 + $0x50] sm:$0xf]
        %v551 = vld [vmem:[%s533 + $0x54] sm:$0xf]
        %v552 = vld [vmem:[%s533 + $0x58] sm:$0xf]
        %v553 = vld [vmem:[%s533 + $0x5c] sm:$0xf]
        %v554 = vld [vmem:[%s533 + $0x60] sm:$0xf]
        %v555 = vld [vmem:[%s533 + $0x64] sm:$0xf]
        %v556 = vld [vmem:[%s533 + $0x68] sm:$0xf]
        %v557 = vld [vmem:[%s533 + $0x6c] sm:$0xf]
        %v558 = vld [vmem:[%s533 + $0x78] sm:$0xf]
        %v559 = vld [vmem:[%s533 + $0x7c] sm:$0xf]
        %v560 = vld [vmem:[%s533 + $0x80] sm:$0xf]
        %v561 = vld [vmem:[%s533 + $0x84] sm:$0xf]
        %v562 = vld [vmem:[%s533 + $0x88] sm:$0xf]
        %v563 = vld [vmem:[%s533 + $0x8c] sm:$0xf]
        %v564 = vld [vmem:[%s533 + $0x90] sm:$0xf]
        %v565 = vld [vmem:[%s533 + $0x94] sm:$0xf]
        %v854 = vunpack.c.l.b16 %v252
        %v855 = vunpack.c.l.b16 %v287
        %v856 = vunpack.c.l.b16 %v322
        %v857 = vunpack.c.l.b16 %v358
        %v858 = vunpack.c.l.b16 %v393
        %v859 = vunpack.c.l.b16 %v428
        %v860 = vunpack.c.l.b16 %v464
        %v861 = vunpack.c.l.b16 %v499
        %v862 = vunpack.c.l.b16 %v534
        %v863 = vunpack.c.l.b16 %v253
        %v864 = vunpack.c.l.b16 %v288
        %v865 = vunpack.c.l.b16 %v323
        %v866 = vunpack.c.l.b16 %v359
        %v867 = vunpack.c.l.b16 %v394
        %v868 = vunpack.c.l.b16 %v429
        %v869 = vunpack.c.l.b16 %v465
        %v870 = vunpack.c.l.b16 %v500
        %v871 = vunpack.c.l.b16 %v535
        %v872 = vunpack.c.l.b16 %v254
        %v873 = vunpack.c.l.b16 %v289
        %v874 = vunpack.c.l.b16 %v324
        %v875 = vunpack.c.l.b16 %v360
        %v876 = vunpack.c.l.b16 %v395
        %v877 = vunpack.c.l.b16 %v430
        %v878 = vunpack.c.l.b16 %v466
        %v879 = vunpack.c.l.b16 %v501
        %v880 = vunpack.c.l.b16 %v536
        %v881 = vunpack.c.l.b16 %v255
        %v882 = vunpack.c.l.b16 %v290
        %v883 = vunpack.c.l.b16 %v325
        %v884 = vunpack.c.l.b16 %v361
        %v885 = vunpack.c.l.b16 %v396
        %v886 = vunpack.c.l.b16 %v431
        %v887 = vunpack.c.l.b16 %v467
        %v888 = vunpack.c.l.b16 %v502
        %v889 = vunpack.c.l.b16 %v537
        %v890 = vunpack.c.l.b16 %v256
        %v891 = vunpack.c.l.b16 %v291
        %v892 = vunpack.c.l.b16 %v326
        %v893 = vunpack.c.l.b16 %v362
        %v894 = vunpack.c.l.b16 %v397
        %v895 = vunpack.c.l.b16 %v432
        %v896 = vunpack.c.l.b16 %v468
        %v897 = vunpack.c.l.b16 %v503
        %v898 = vunpack.c.l.b16 %v538
        %v899 = vunpack.c.l.b16 %v257
        %v900 = vunpack.c.l.b16 %v292
        %v901 = vunpack.c.l.b16 %v327
        %v902 = vunpack.c.l.b16 %v363
        %v903 = vunpack.c.l.b16 %v398
        %v904 = vunpack.c.l.b16 %v433
        %v905 = vunpack.c.l.b16 %v469
        %v906 = vunpack.c.l.b16 %v504
        %v907 = vunpack.c.l.b16 %v539
        %v908 = vunpack.c.l.b16 %v258
        %v909 = vunpack.c.l.b16 %v293
        %v910 = vunpack.c.l.b16 %v328
        %v911 = vunpack.c.l.b16 %v364
        %v912 = vunpack.c.l.b16 %v399
        %v913 = vunpack.c.l.b16 %v434
        %v914 = vunpack.c.l.b16 %v470
        %v915 = vunpack.c.l.b16 %v505
        %v916 = vunpack.c.l.b16 %v540
        %v917 = vunpack.c.l.b16 %v259
        %v918 = vunpack.c.l.b16 %v294
        %v919 = vunpack.c.l.b16 %v329
        %v920 = vunpack.c.l.b16 %v365
        %v921 = vunpack.c.l.b16 %v400
        %v922 = vunpack.c.l.b16 %v435
        %v923 = vunpack.c.l.b16 %v471
        %v924 = vunpack.c.l.b16 %v506
        %v925 = vunpack.c.l.b16 %v541
        %v926 = vunpack.c.l.b16 %v260
        %v927 = vunpack.c.l.b16 %v295
        %v928 = vunpack.c.l.b16 %v330
        %v929 = vunpack.c.l.b16 %v366
        %v930 = vunpack.c.l.b16 %v401
        %v931 = vunpack.c.l.b16 %v436
        %v932 = vunpack.c.l.b16 %v472
        %v933 = vunpack.c.l.b16 %v507
        %v934 = vunpack.c.l.b16 %v542
        %v935 = vunpack.c.l.b16 %v261
        %v936 = vunpack.c.l.b16 %v296
        %v937 = vunpack.c.l.b16 %v331
        %v938 = vunpack.c.l.b16 %v367
        %v939 = vunpack.c.l.b16 %v402
        %v940 = vunpack.c.l.b16 %v437
        %v941 = vunpack.c.l.b16 %v473
        %v942 = vunpack.c.l.b16 %v508
        %v943 = vunpack.c.l.b16 %v543
        %v944 = vunpack.c.l.b16 %v262
        %v945 = vunpack.c.l.b16 %v297
        %v946 = vunpack.c.l.b16 %v332
        %v947 = vunpack.c.l.b16 %v368
        %v948 = vunpack.c.l.b16 %v403
        %v949 = vunpack.c.l.b16 %v438
        %v950 = vunpack.c.l.b16 %v474
        %v951 = vunpack.c.l.b16 %v509
        %v952 = vunpack.c.l.b16 %v544
        %v953 = vunpack.c.l.b16 %v263
        %v954 = vunpack.c.l.b16 %v298
        %v955 = vunpack.c.l.b16 %v333
        %v956 = vunpack.c.l.b16 %v369
        %v957 = vunpack.c.l.b16 %v404
        %v958 = vunpack.c.l.b16 %v439
        %v959 = vunpack.c.l.b16 %v475
        %v960 = vunpack.c.l.b16 %v510
        %v961 = vunpack.c.l.b16 %v545
        %v962 = vunpack.c.l.b16 %v264
        %v963 = vunpack.c.l.b16 %v299
        %v964 = vunpack.c.l.b16 %v334
        %v965 = vunpack.c.l.b16 %v370
        %v966 = vunpack.c.l.b16 %v405
        %v967 = vunpack.c.l.b16 %v440
        %v968 = vunpack.c.l.b16 %v476
        %v969 = vunpack.c.l.b16 %v511
        %v970 = vunpack.c.l.b16 %v546
        %v971 = vunpack.c.l.b16 %v265
        %v972 = vunpack.c.l.b16 %v300
        %v973 = vunpack.c.l.b16 %v335
        %v974 = vunpack.c.l.b16 %v371
        %v975 = vunpack.c.l.b16 %v406
        %v976 = vunpack.c.l.b16 %v441
        %v977 = vunpack.c.l.b16 %v477
        %v978 = vunpack.c.l.b16 %v512
        %v979 = vunpack.c.l.b16 %v547
        %v980 = vunpack.c.l.b16 %v266
        %v981 = vunpack.c.l.b16 %v301
        %v982 = vunpack.c.l.b16 %v336
        %v983 = vunpack.c.l.b16 %v372
        %v984 = vunpack.c.l.b16 %v407
        %v985 = vunpack.c.l.b16 %v442
        %v986 = vunpack.c.l.b16 %v478
        %v987 = vunpack.c.l.b16 %v513
        %v988 = vunpack.c.l.b16 %v548
        %v989 = vunpack.c.l.b16 %v267
        %v990 = vunpack.c.l.b16 %v302
        %v991 = vunpack.c.l.b16 %v337
        %v992 = vunpack.c.l.b16 %v373
        %v993 = vunpack.c.l.b16 %v408
        %v994 = vunpack.c.l.b16 %v443
        %v995 = vunpack.c.l.b16 %v479
        %v996 = vunpack.c.l.b16 %v514
        %v997 = vunpack.c.l.b16 %v549
        %v998 = vunpack.c.l.b16 %v268
        %v999 = vunpack.c.l.b16 %v303
        %v1000 = vunpack.c.l.b16 %v338
        %v1001 = vunpack.c.l.b16 %v374
        %v1002 = vunpack.c.l.b16 %v409
        %v1003 = vunpack.c.l.b16 %v444
        %v1004 = vunpack.c.l.b16 %v480
        %v1005 = vunpack.c.l.b16 %v515
        %v1006 = vunpack.c.l.b16 %v550
        %v1007 = vunpack.c.l.b16 %v269
        %v1008 = vunpack.c.l.b16 %v304
        %v1009 = vunpack.c.l.b16 %v339
        %v1010 = vunpack.c.l.b16 %v375
        %v1011 = vunpack.c.l.b16 %v410
        %v1012 = vunpack.c.l.b16 %v445
        %v1013 = vunpack.c.l.b16 %v481
        %v1014 = vunpack.c.l.b16 %v516
        %v1015 = vunpack.c.l.b16 %v551
        %v1016 = vunpack.c.l.b16 %v270
        %v1017 = vunpack.c.l.b16 %v305
        %v1018 = vunpack.c.l.b16 %v340
        %v1019 = vunpack.c.l.b16 %v376
        %v1020 = vunpack.c.l.b16 %v411
        %v1021 = vunpack.c.l.b16 %v446
        %v1022 = vunpack.c.l.b16 %v482
        %v1023 = vunpack.c.l.b16 %v517
        %v1024 = vunpack.c.l.b16 %v552
        %v1025 = vunpack.c.l.b16 %v271
        %v1026 = vunpack.c.l.b16 %v306
        %v1027 = vunpack.c.l.b16 %v341
        %v1028 = vunpack.c.l.b16 %v377
        %v1029 = vunpack.c.l.b16 %v412
        %v1030 = vunpack.c.l.b16 %v447
        %v1031 = vunpack.c.l.b16 %v483
        %v1032 = vunpack.c.l.b16 %v518
        %v1033 = vunpack.c.l.b16 %v553
        %v1034 = vunpack.c.l.b16 %v272
        %v1035 = vunpack.c.l.b16 %v307
        %v1036 = vunpack.c.l.b16 %v342
        %v1037 = vunpack.c.l.b16 %v378
        %v1038 = vunpack.c.l.b16 %v413
        %v1039 = vunpack.c.l.b16 %v448
        %v1040 = vunpack.c.l.b16 %v484
        %v1041 = vunpack.c.l.b16 %v519
        %v1042 = vunpack.c.l.b16 %v554
        %v1043 = vunpack.c.l.b16 %v273
        %v1044 = vunpack.c.l.b16 %v308
        %v1045 = vunpack.c.l.b16 %v343
        %v1046 = vunpack.c.l.b16 %v379
        %v1047 = vunpack.c.l.b16 %v414
        %v1048 = vunpack.c.l.b16 %v449
        %v1049 = vunpack.c.l.b16 %v485
        %v1050 = vunpack.c.l.b16 %v520
        %v1051 = vunpack.c.l.b16 %v555
        %v1052 = vunpack.c.l.b16 %v274
        %v1053 = vunpack.c.l.b16 %v309
        %v1054 = vunpack.c.l.b16 %v344
        %v1055 = vunpack.c.l.b16 %v380
        %v1056 = vunpack.c.l.b16 %v415
        %v1057 = vunpack.c.l.b16 %v450
        %v1058 = vunpack.c.l.b16 %v486
        %v1059 = vunpack.c.l.b16 %v521
        %v1060 = vunpack.c.l.b16 %v556
        %v1061 = vunpack.c.l.b16 %v275
        %v1062 = vunpack.c.l.b16 %v310
        %v1063 = vunpack.c.l.b16 %v345
        %v1064 = vunpack.c.l.b16 %v381
        %v1065 = vunpack.c.l.b16 %v416
        %v1066 = vunpack.c.l.b16 %v451
        %v1067 = vunpack.c.l.b16 %v487
        %v1068 = vunpack.c.l.b16 %v522
        %v1069 = vunpack.c.l.b16 %v557
        %v1070 = vunpack.c.l.b16 %v276
        %v1071 = vunpack.c.l.b16 %v311
        %v1072 = vunpack.c.l.b16 %v346
        %v1073 = vunpack.c.l.b16 %v382
        %v1074 = vunpack.c.l.b16 %v417
        %v1075 = vunpack.c.l.b16 %v452
        %v1076 = vunpack.c.l.b16 %v488
        %v1077 = vunpack.c.l.b16 %v523
        %v1078 = vunpack.c.l.b16 %v558
        %v1079 = vunpack.c.l.b16 %v277
        %v1080 = vunpack.c.l.b16 %v312
        %v1081 = vunpack.c.l.b16 %v347
        %v1082 = vunpack.c.l.b16 %v383
        %v1083 = vunpack.c.l.b16 %v418
        %v1084 = vunpack.c.l.b16 %v453
        %v1085 = vunpack.c.l.b16 %v489
        %v1086 = vunpack.c.l.b16 %v524
        %v1087 = vunpack.c.l.b16 %v559
        %v1088 = vunpack.c.l.b16 %v278
        %v1089 = vunpack.c.l.b16 %v313
        %v1090 = vunpack.c.l.b16 %v348
        %v1091 = vunpack.c.l.b16 %v384
        %v1092 = vunpack.c.l.b16 %v419
        %v1093 = vunpack.c.l.b16 %v454
        %v1094 = vunpack.c.l.b16 %v490
        %v1095 = vunpack.c.l.b16 %v525
        %v1096 = vunpack.c.l.b16 %v560
        %v1097 = vunpack.c.l.b16 %v279
        %v1098 = vunpack.c.l.b16 %v314
        %v1099 = vunpack.c.l.b16 %v349
        %v1100 = vunpack.c.l.b16 %v385
        %v1101 = vunpack.c.l.b16 %v420
        %v1102 = vunpack.c.l.b16 %v455
        %v1103 = vunpack.c.l.b16 %v491
        %v1104 = vunpack.c.l.b16 %v526
        %v1105 = vunpack.c.l.b16 %v561
        %v1106 = vunpack.c.l.b16 %v280
        %v1107 = vunpack.c.l.b16 %v315
        %v1108 = vunpack.c.l.b16 %v350
        %v1109 = vunpack.c.l.b16 %v386
        %v1110 = vunpack.c.l.b16 %v421
        %v1111 = vunpack.c.l.b16 %v456
        %v1112 = vunpack.c.l.b16 %v492
        %v1113 = vunpack.c.l.b16 %v527
        %v1114 = vunpack.c.l.b16 %v562
        %v1115 = vunpack.c.l.b16 %v281
        %v1116 = vunpack.c.l.b16 %v316
        %v1117 = vunpack.c.l.b16 %v351
        %v1118 = vunpack.c.l.b16 %v387
        %v1119 = vunpack.c.l.b16 %v422
        %v1120 = vunpack.c.l.b16 %v457
        %v1121 = vunpack.c.l.b16 %v493
        %v1122 = vunpack.c.l.b16 %v528
        %v1123 = vunpack.c.l.b16 %v563
        %v1124 = vunpack.c.l.b16 %v282
        %v1125 = vunpack.c.l.b16 %v317
        %v1126 = vunpack.c.l.b16 %v352
        %v1127 = vunpack.c.l.b16 %v388
        %v1128 = vunpack.c.l.b16 %v423
        %v1129 = vunpack.c.l.b16 %v458
        %v1130 = vunpack.c.l.b16 %v494
        %v1131 = vunpack.c.l.b16 %v529
        %v1132 = vunpack.c.l.b16 %v564
        %v1133 = vunpack.c.l.b16 %v283
        %v1134 = vunpack.c.l.b16 %v318
        %v1135 = vunpack.c.l.b16 %v353
        %v1136 = vunpack.c.l.b16 %v389
        %v1137 = vunpack.c.l.b16 %v424
        %v1138 = vunpack.c.l.b16 %v459
        %v1139 = vunpack.c.l.b16 %v495
        %v1140 = vunpack.c.l.b16 %v530
        %v1141 = vunpack.c.l.b16 %v565
        %v1142 = vld [vmem:[#allocation6] sm:$0xf]
        %v1143 = vld [vmem:[#allocation6 + $0x4] sm:$0xf]
        %v1144 = vld [vmem:[#allocation6 + $0x8] sm:$0xf]
        %v1145 = vld [vmem:[#allocation6 + $0xc] sm:$0xf]
        %v1146 = vld [vmem:[#allocation6 + $0x10] sm:$0xf]
        %v1147 = vld [vmem:[#allocation6 + $0x14] sm:$0xf]
        %v1148 = vld [vmem:[#allocation6 + $0x18] sm:$0xf]
        %v1149 = vld [vmem:[#allocation6 + $0x1c] sm:$0xf]
        %v1150 = vld [vmem:[#allocation6 + $0x20] sm:$0xf]
        %v1151 = vld [vmem:[#allocation6 + $0x24] sm:$0xf]
        %v1152 = vld [vmem:[#allocation6 + $0x28] sm:$0xf]
        %v1153 = vld [vmem:[#allocation6 + $0x2c] sm:$0xf]
        %v1154 = vld [vmem:[#allocation6 + $0x30] sm:$0xf]
        %v1155 = vld [vmem:[#allocation6 + $0x34] sm:$0xf]
        %v1156 = vld [vmem:[#allocation6 + $0x38] sm:$0xf]
        %v1157 = vld [vmem:[#allocation6 + $0x3c] sm:$0xf]
        %v1158 = vld [vmem:[#allocation6 + $0x40] sm:$0xf]
        %v1159 = vld [vmem:[#allocation6 + $0x44] sm:$0xf]
        %v1160 = vld [vmem:[#allocation6 + $0x48] sm:$0xf]
        %v1161 = vld [vmem:[#allocation6 + $0x4c] sm:$0xf]
        %v1162 = vld [vmem:[#allocation6 + $0x50] sm:$0xf]
        %v1163 = vld [vmem:[#allocation6 + $0x54] sm:$0xf]
        %v1164 = vld [vmem:[#allocation6 + $0x58] sm:$0xf]
        %v1165 = vld [vmem:[#allocation6 + $0x5c] sm:$0xf]
        %v1166 = vld [vmem:[#allocation6 + $0x60] sm:$0xf]
        %v1167 = vld [vmem:[#allocation6 + $0x64] sm:$0xf]
        %v1168 = vld [vmem:[#allocation6 + $0x68] sm:$0xf]
        %v1169 = vld [vmem:[#allocation6 + $0x6c] sm:$0xf]
        %v1170 = vld [vmem:[#allocation6 + $0x70] sm:$0xf]
        %v1171 = vld [vmem:[#allocation6 + $0x74] sm:$0xf]
        %v1172 = vld [vmem:[#allocation6 + $0x78] sm:$0xf]
        %v1173 = vld [vmem:[#allocation6 + $0x7c] sm:$0xf]
        %v1174 = vld [vmem:[#allocation6 + $0x80] sm:$0xf]
        %v1175 = vld [vmem:[#allocation6 + $0x84] sm:$0xf]
        %v1176 = vld [vmem:[#allocation6 + $0x88] sm:$0xf]
        %v1177 = vld [vmem:[#allocation6 + $0x8c] sm:$0xf]
        %v1178 = vld [vmem:[#allocation6 + $0x90] sm:$0xf]
        %v1179 = vld [vmem:[#allocation6 + $0x94] sm:$0xf]
        %v1180 = vld [vmem:[#allocation6 + $0x98] sm:$0xf]
        %v1181 = vld [vmem:[#allocation6 + $0x9c] sm:$0xf]
        %v1182 = vld [vmem:[#allocation6 + $0xa0] sm:$0xf]
        %v1183 = vld [vmem:[#allocation6 + $0xa4] sm:$0xf]
        %v1184 = vld [vmem:[#allocation6 + $0xa8] sm:$0xf]
        %v1185 = vld [vmem:[#allocation6 + $0xac] sm:$0xf]
        %v1186 = vld [vmem:[#allocation6 + $0xb0] sm:$0xf]
        %v1187 = vld [vmem:[#allocation6 + $0xb4] sm:$0xf]
        %v1188 = vld [vmem:[#allocation6 + $0xb8] sm:$0xf]
        %v1189 = vld [vmem:[#allocation6 + $0xbc] sm:$0xf]
        %v1190 = vld [vmem:[#allocation6 + $0xc0] sm:$0xf]
        %v1191 = vld [vmem:[#allocation6 + $0xc4] sm:$0xf]
        %v1192 = vld [vmem:[#allocation6 + $0xc8] sm:$0xf]
        %v1193 = vld [vmem:[#allocation6 + $0xcc] sm:$0xf]
        %v1194 = vld [vmem:[#allocation6 + $0xd0] sm:$0xf]
        %v1195 = vld [vmem:[#allocation6 + $0xd4] sm:$0xf]
        %v1196 = vld [vmem:[#allocation6 + $0xd8] sm:$0xf]
        %v1197 = vld [vmem:[#allocation6 + $0xdc] sm:$0xf]
        %v1198 = vld [vmem:[#allocation6 + $0xe0] sm:$0xf]
        %v1199 = vld [vmem:[#allocation6 + $0xe4] sm:$0xf]
        %v1200 = vld [vmem:[#allocation6 + $0xe8] sm:$0xf]
        %v1201 = vld [vmem:[#allocation6 + $0xec] sm:$0xf]
        %v1202 = vld [vmem:[#allocation6 + $0xf0] sm:$0xf]
        %v1203 = vld [vmem:[#allocation6 + $0xf4] sm:$0xf]
        %v1204 = vld [vmem:[#allocation6 + $0xf8] sm:$0xf]
        %v1205 = vld [vmem:[#allocation6 + $0xfc] sm:$0xf]
        %v1206 = vld [vmem:[#allocation6 + $0x100] sm:$0xf]
        %v1207 = vld [vmem:[#allocation6 + $0x104] sm:$0xf]
        %v1208 = vld [vmem:[#allocation6 + $0x108] sm:$0xf]
        %v1209 = vld [vmem:[#allocation6 + $0x10c] sm:$0xf]
        %v1210 = vld [vmem:[#allocation6 + $0x110] sm:$0xf]
        %v1211 = vld [vmem:[#allocation6 + $0x114] sm:$0xf]
        %v1212 = vld [vmem:[#allocation6 + $0x118] sm:$0xf]
        %v1213 = vld [vmem:[#allocation6 + $0x11c] sm:$0xf]
        %v1214 = vld [vmem:[#allocation6 + $0x120] sm:$0xf]
        %v1215 = vld [vmem:[#allocation6 + $0x124] sm:$0xf]
        %v1216 = vld [vmem:[#allocation6 + $0x128] sm:$0xf]
        %v1217 = vld [vmem:[#allocation6 + $0x12c] sm:$0xf]
        %v1218 = vld [vmem:[#allocation6 + $0x130] sm:$0xf]
        %v1219 = vld [vmem:[#allocation6 + $0x134] sm:$0xf]
        %v1220 = vld [vmem:[#allocation6 + $0x138] sm:$0xf]
        %v1221 = vld [vmem:[#allocation6 + $0x13c] sm:$0xf]
        %v1222 = vld [vmem:[#allocation6 + $0x140] sm:$0xf]
        %v1223 = vld [vmem:[#allocation6 + $0x144] sm:$0xf]
        %v1224 = vld [vmem:[#allocation6 + $0x148] sm:$0xf]
        %v1225 = vld [vmem:[#allocation6 + $0x14c] sm:$0xf]
        %v1226 = vld [vmem:[#allocation6 + $0x150] sm:$0xf]
        %v1227 = vld [vmem:[#allocation6 + $0x154] sm:$0xf]
        %v1228 = vld [vmem:[#allocation6 + $0x158] sm:$0xf]
        %v1229 = vld [vmem:[#allocation6 + $0x15c] sm:$0xf]
        %v1230 = vld [vmem:[#allocation6 + $0x160] sm:$0xf]
        %v1231 = vld [vmem:[#allocation6 + $0x164] sm:$0xf]
        %v1232 = vld [vmem:[#allocation6 + $0x168] sm:$0xf]
        %v1233 = vld [vmem:[#allocation6 + $0x16c] sm:$0xf]
        %v1234 = vld [vmem:[#allocation6 + $0x170] sm:$0xf]
        %v1235 = vld [vmem:[#allocation6 + $0x174] sm:$0xf]
        %v1236 = vld [vmem:[#allocation6 + $0x178] sm:$0xf]
        %v1237 = vld [vmem:[#allocation6 + $0x17c] sm:$0xf]
        %v1238 = vld [vmem:[#allocation6 + $0x180] sm:$0xf]
        %v1239 = vld [vmem:[#allocation6 + $0x184] sm:$0xf]
        %v1240 = vld [vmem:[#allocation6 + $0x188] sm:$0xf]
        %v1241 = vld [vmem:[#allocation6 + $0x18c] sm:$0xf]
        %v1242 = vld [vmem:[#allocation6 + $0x190] sm:$0xf]
        %v1243 = vld [vmem:[#allocation6 + $0x194] sm:$0xf]
        %v1244 = vld [vmem:[#allocation6 + $0x198] sm:$0xf]
        %v1245 = vld [vmem:[#allocation6 + $0x19c] sm:$0xf]
        %v1246 = vld [vmem:[#allocation6 + $0x1a0] sm:$0xf]
        %v1247 = vld [vmem:[#allocation6 + $0x1a4] sm:$0xf]
        %v1248 = vld [vmem:[#allocation6 + $0x1a8] sm:$0xf]
        %v1249 = vld [vmem:[#allocation6 + $0x1ac] sm:$0xf]
        %v1250 = vld [vmem:[#allocation6 + $0x1b0] sm:$0xf]
        %v1251 = vld [vmem:[#allocation6 + $0x1b4] sm:$0xf]
        %v1252 = vld [vmem:[#allocation6 + $0x1b8] sm:$0xf]
        %v1253 = vld [vmem:[#allocation6 + $0x1bc] sm:$0xf]
        %v1254 = vld [vmem:[#allocation6 + $0x1c0] sm:$0xf]
        %v1255 = vld [vmem:[#allocation6 + $0x1c4] sm:$0xf]
        %v1256 = vld [vmem:[#allocation6 + $0x1c8] sm:$0xf]
        %v1257 = vld [vmem:[#allocation6 + $0x1cc] sm:$0xf]
        %v1258 = vld [vmem:[#allocation6 + $0x1d0] sm:$0xf]
        %v1259 = vld [vmem:[#allocation6 + $0x1d4] sm:$0xf]
        %v1260 = vld [vmem:[#allocation6 + $0x1d8] sm:$0xf]
        %v1261 = vld [vmem:[#allocation6 + $0x1dc] sm:$0xf]
        %v1262 = vld [vmem:[#allocation6 + $0x1e0] sm:$0xf]
        %v1263 = vld [vmem:[#allocation6 + $0x1e4] sm:$0xf]
        %v1264 = vld [vmem:[#allocation6 + $0x1e8] sm:$0xf]
        %v1265 = vld [vmem:[#allocation6 + $0x1ec] sm:$0xf]
        %v1266 = vld [vmem:[#allocation6 + $0x1f0] sm:$0xf]
        %v1267 = vld [vmem:[#allocation6 + $0x1f4] sm:$0xf]
        %v1268 = vld [vmem:[#allocation6 + $0x1f8] sm:$0xf]
        %v1269 = vld [vmem:[#allocation6 + $0x1fc] sm:$0xf]
        %v1270 = vld [vmem:[#allocation6 + $0x200] sm:$0xf]
        %v1271 = vld [vmem:[#allocation6 + $0x204] sm:$0xf]
        %v1272 = vld [vmem:[#allocation6 + $0x208] sm:$0xf]
        %v1273 = vld [vmem:[#allocation6 + $0x20c] sm:$0xf]
        %v1274 = vld [vmem:[#allocation6 + $0x210] sm:$0xf]
        %v1275 = vld [vmem:[#allocation6 + $0x214] sm:$0xf]
        %v1276 = vld [vmem:[#allocation6 + $0x218] sm:$0xf]
        %v1277 = vld [vmem:[#allocation6 + $0x21c] sm:$0xf]
        %v1278 = vld [vmem:[#allocation6 + $0x220] sm:$0xf]
        %v1279 = vld [vmem:[#allocation6 + $0x224] sm:$0xf]
        %v1280 = vld [vmem:[#allocation6 + $0x228] sm:$0xf]
        %v1281 = vld [vmem:[#allocation6 + $0x22c] sm:$0xf]
        %v1282 = vld [vmem:[#allocation6 + $0x230] sm:$0xf]
        %v1283 = vld [vmem:[#allocation6 + $0x234] sm:$0xf]
        %v1284 = vld [vmem:[#allocation6 + $0x238] sm:$0xf]
        %v1285 = vld [vmem:[#allocation6 + $0x23c] sm:$0xf]
        %v1286 = vld [vmem:[%s2] sm:$0x1]
        %v1288 = vlaneseq
        %v1289 = vshrl.u32 %v1288, 7
        %v1290 = vsub.s32 0, %v1289
        %v1291 = vrot.slane %v1286, %v1290
        %v1293 = vpack.c.b16 %v863, %v854
        %v1294 = vpack.c.b16 %v864, %v855
        %v1295 = vpack.c.b16 %v865, %v856
        %v1296 = vpack.c.b16 %v866, %v857
        %v1297 = vpack.c.b16 %v867, %v858
        %v1298 = vpack.c.b16 %v868, %v859
        %v1299 = vpack.c.b16 %v869, %v860
        %v1300 = vpack.c.b16 %v870, %v861
        %v1301 = vpack.c.b16 %v871, %v862
        %v1302 = vpack.c.b16 %v881, %v872
        %v1303 = vpack.c.b16 %v882, %v873
        %v1304 = vpack.c.b16 %v883, %v874
        %v1305 = vpack.c.b16 %v884, %v875
        %v1306 = vpack.c.b16 %v885, %v876
        %v1307 = vpack.c.b16 %v886, %v877
        %v1308 = vpack.c.b16 %v887, %v878
        %v1309 = vpack.c.b16 %v888, %v879
        %v1310 = vpack.c.b16 %v889, %v880
        %v1311 = vpack.c.b16 %v899, %v890
        %v1312 = vpack.c.b16 %v900, %v891
        %v1313 = vpack.c.b16 %v901, %v892
        %v1314 = vpack.c.b16 %v902, %v893
        %v1315 = vpack.c.b16 %v903, %v894
        %v1316 = vpack.c.b16 %v904, %v895
        %v1317 = vpack.c.b16 %v905, %v896
        %v1318 = vpack.c.b16 %v906, %v897
        %v1319 = vpack.c.b16 %v907, %v898
        %v1320 = vpack.c.b16 %v917, %v908
        %v1321 = vpack.c.b16 %v918, %v909
        %v1322 = vpack.c.b16 %v919, %v910
        %v1323 = vpack.c.b16 %v920, %v911
        %v1324 = vpack.c.b16 %v921, %v912
        %v1325 = vpack.c.b16 %v922, %v913
        %v1326 = vpack.c.b16 %v923, %v914
        %v1327 = vpack.c.b16 %v924, %v915
        %v1328 = vpack.c.b16 %v925, %v916
        %v1329 = vpack.c.b16 %v935, %v926
        %v1330 = vpack.c.b16 %v936, %v927
        %v1331 = vpack.c.b16 %v937, %v928
        %v1332 = vpack.c.b16 %v938, %v929
        %v1333 = vpack.c.b16 %v939, %v930
        %v1334 = vpack.c.b16 %v940, %v931
        %v1335 = vpack.c.b16 %v941, %v932
        %v1336 = vpack.c.b16 %v942, %v933
        %v1337 = vpack.c.b16 %v943, %v934
        %v1338 = vpack.c.b16 %v953, %v944
        %v1339 = vpack.c.b16 %v954, %v945
        %v1340 = vpack.c.b16 %v955, %v946
        %v1341 = vpack.c.b16 %v956, %v947
        %v1342 = vpack.c.b16 %v957, %v948
        %v1343 = vpack.c.b16 %v958, %v949
        %v1344 = vpack.c.b16 %v959, %v950
        %v1345 = vpack.c.b16 %v960, %v951
        %v1346 = vpack.c.b16 %v961, %v952
        %v1347 = vpack.c.b16 %v971, %v962
        %v1348 = vpack.c.b16 %v972, %v963
        %v1349 = vpack.c.b16 %v973, %v964
        %v1350 = vpack.c.b16 %v974, %v965
        %v1351 = vpack.c.b16 %v975, %v966
        %v1352 = vpack.c.b16 %v976, %v967
        %v1353 = vpack.c.b16 %v977, %v968
        %v1354 = vpack.c.b16 %v978, %v969
        %v1355 = vpack.c.b16 %v979, %v970
        %v1356 = vpack.c.b16 %v989, %v980
        %v1357 = vpack.c.b16 %v990, %v981
        %v1358 = vpack.c.b16 %v991, %v982
        %v1359 = vpack.c.b16 %v992, %v983
        %v1360 = vpack.c.b16 %v993, %v984
        %v1361 = vpack.c.b16 %v994, %v985
        %v1362 = vpack.c.b16 %v995, %v986
        %v1363 = vpack.c.b16 %v996, %v987
        %v1364 = vpack.c.b16 %v997, %v988
        %v1365 = vpack.c.b16 %v1007, %v998
        %v1366 = vpack.c.b16 %v1008, %v999
        %v1367 = vpack.c.b16 %v1009, %v1000
        %v1368 = vpack.c.b16 %v1010, %v1001
        %v1369 = vpack.c.b16 %v1011, %v1002
        %v1370 = vpack.c.b16 %v1012, %v1003
        %v1371 = vpack.c.b16 %v1013, %v1004
        %v1372 = vpack.c.b16 %v1014, %v1005
        %v1373 = vpack.c.b16 %v1015, %v1006
        %v1374 = vpack.c.b16 %v1025, %v1016
        %v1375 = vpack.c.b16 %v1026, %v1017
        %v1376 = vpack.c.b16 %v1027, %v1018
        %v1377 = vpack.c.b16 %v1028, %v1019
        %v1378 = vpack.c.b16 %v1029, %v1020
        %v1379 = vpack.c.b16 %v1030, %v1021
        %v1380 = vpack.c.b16 %v1031, %v1022
        %v1381 = vpack.c.b16 %v1032, %v1023
        %v1382 = vpack.c.b16 %v1033, %v1024
        %v1383 = vpack.c.b16 %v1043, %v1034
        %v1384 = vpack.c.b16 %v1044, %v1035
        %v1385 = vpack.c.b16 %v1045, %v1036
        %v1386 = vpack.c.b16 %v1046, %v1037
        %v1387 = vpack.c.b16 %v1047, %v1038
        %v1388 = vpack.c.b16 %v1048, %v1039
        %v1389 = vpack.c.b16 %v1049, %v1040
        %v1390 = vpack.c.b16 %v1050, %v1041
        %v1391 = vpack.c.b16 %v1051, %v1042
        %v1392 = vpack.c.b16 %v1061, %v1052
        %v1393 = vpack.c.b16 %v1062, %v1053
        %v1394 = vpack.c.b16 %v1063, %v1054
        %v1395 = vpack.c.b16 %v1064, %v1055
        %v1396 = vpack.c.b16 %v1065, %v1056
        %v1397 = vpack.c.b16 %v1066, %v1057
        %v1398 = vpack.c.b16 %v1067, %v1058
        %v1399 = vpack.c.b16 %v1068, %v1059
        %v1400 = vpack.c.b16 %v1069, %v1060
        %v1401 = vpack.c.b16 %v1079, %v1070
        %v1402 = vpack.c.b16 %v1080, %v1071
        %v1403 = vpack.c.b16 %v1081, %v1072
        %v1404 = vpack.c.b16 %v1082, %v1073
        %v1405 = vpack.c.b16 %v1083, %v1074
        %v1406 = vpack.c.b16 %v1084, %v1075
        %v1407 = vpack.c.b16 %v1085, %v1076
        %v1408 = vpack.c.b16 %v1086, %v1077
        %v1409 = vpack.c.b16 %v1087, %v1078
        %v1410 = vpack.c.b16 %v1097, %v1088
        %v1411 = vpack.c.b16 %v1098, %v1089
        %v1412 = vpack.c.b16 %v1099, %v1090
        %v1413 = vpack.c.b16 %v1100, %v1091
        %v1414 = vpack.c.b16 %v1101, %v1092
        %v1415 = vpack.c.b16 %v1102, %v1093
        %v1416 = vpack.c.b16 %v1103, %v1094
        %v1417 = vpack.c.b16 %v1104, %v1095
        %v1418 = vpack.c.b16 %v1105, %v1096
        %v1419 = vpack.c.b16 %v1115, %v1106
        %v1420 = vpack.c.b16 %v1116, %v1107
        %v1421 = vpack.c.b16 %v1117, %v1108
        %v1422 = vpack.c.b16 %v1118, %v1109
        %v1423 = vpack.c.b16 %v1119, %v1110
        %v1424 = vpack.c.b16 %v1120, %v1111
        %v1425 = vpack.c.b16 %v1121, %v1112
        %v1426 = vpack.c.b16 %v1122, %v1113
        %v1427 = vpack.c.b16 %v1123, %v1114
        %v1428 = vpack.c.b16 %v1133, %v1124
        %v1429 = vpack.c.b16 %v1134, %v1125
        %v1430 = vpack.c.b16 %v1135, %v1126
        %v1431 = vpack.c.b16 %v1136, %v1127
        %v1432 = vpack.c.b16 %v1137, %v1128
        %v1433 = vpack.c.b16 %v1138, %v1129
        %v1434 = vpack.c.b16 %v1139, %v1130
        %v1435 = vpack.c.b16 %v1140, %v1131
        %v1436 = vpack.c.b16 %v1141, %v1132
        %v1725 = vunpack.c.l.b16 %v1142
        %v1726 = vunpack.c.l.b16 %v1143
        %v1727 = vunpack.c.l.b16 %v1144
        %v1728 = vunpack.c.l.b16 %v1145
        %v1729 = vunpack.c.l.b16 %v1146
        %v1730 = vunpack.c.l.b16 %v1147
        %v1731 = vunpack.c.l.b16 %v1148
        %v1732 = vunpack.c.l.b16 %v1149
        %v1733 = vunpack.c.l.b16 %v1150
        %v1734 = vunpack.c.l.b16 %v1151
        %v1735 = vunpack.c.l.b16 %v1152
        %v1736 = vunpack.c.l.b16 %v1153
        %v1737 = vunpack.c.l.b16 %v1154
        %v1738 = vunpack.c.l.b16 %v1155
        %v1739 = vunpack.c.l.b16 %v1156
        %v1740 = vunpack.c.l.b16 %v1157
        %v1741 = vunpack.c.l.b16 %v1158
        %v1742 = vunpack.c.l.b16 %v1159
        %v1743 = vunpack.c.l.b16 %v1160
        %v1744 = vunpack.c.l.b16 %v1161
        %v1745 = vunpack.c.l.b16 %v1162
        %v1746 = vunpack.c.l.b16 %v1163
        %v1747 = vunpack.c.l.b16 %v1164
        %v1748 = vunpack.c.l.b16 %v1165
        %v1749 = vunpack.c.l.b16 %v1166
        %v1750 = vunpack.c.l.b16 %v1167
        %v1751 = vunpack.c.l.b16 %v1168
        %v1752 = vunpack.c.l.b16 %v1169
        %v1753 = vunpack.c.l.b16 %v1170
        %v1754 = vunpack.c.l.b16 %v1171
        %v1755 = vunpack.c.l.b16 %v1172
        %v1756 = vunpack.c.l.b16 %v1173
        %v1757 = vunpack.c.l.b16 %v1174
        %v1758 = vunpack.c.l.b16 %v1175
        %v1759 = vunpack.c.l.b16 %v1176
        %v1760 = vunpack.c.l.b16 %v1177
        %v1761 = vunpack.c.l.b16 %v1178
        %v1762 = vunpack.c.l.b16 %v1179
        %v1763 = vunpack.c.l.b16 %v1180
        %v1764 = vunpack.c.l.b16 %v1181
        %v1765 = vunpack.c.l.b16 %v1182
        %v1766 = vunpack.c.l.b16 %v1183
        %v1767 = vunpack.c.l.b16 %v1184
        %v1768 = vunpack.c.l.b16 %v1185
        %v1769 = vunpack.c.l.b16 %v1186
        %v1770 = vunpack.c.l.b16 %v1187
        %v1771 = vunpack.c.l.b16 %v1188
        %v1772 = vunpack.c.l.b16 %v1189
        %v1773 = vunpack.c.l.b16 %v1190
        %v1774 = vunpack.c.l.b16 %v1191
        %v1775 = vunpack.c.l.b16 %v1192
        %v1776 = vunpack.c.l.b16 %v1193
        %v1777 = vunpack.c.l.b16 %v1194
        %v1778 = vunpack.c.l.b16 %v1195
        %v1779 = vunpack.c.l.b16 %v1196
        %v1780 = vunpack.c.l.b16 %v1197
        %v1781 = vunpack.c.l.b16 %v1198
        %v1782 = vunpack.c.l.b16 %v1199
        %v1783 = vunpack.c.l.b16 %v1200
        %v1784 = vunpack.c.l.b16 %v1201
        %v1785 = vunpack.c.l.b16 %v1202
        %v1786 = vunpack.c.l.b16 %v1203
        %v1787 = vunpack.c.l.b16 %v1204
        %v1788 = vunpack.c.l.b16 %v1205
        %v1789 = vunpack.c.l.b16 %v1206
        %v1790 = vunpack.c.l.b16 %v1207
        %v1791 = vunpack.c.l.b16 %v1208
        %v1792 = vunpack.c.l.b16 %v1209
        %v1793 = vunpack.c.l.b16 %v1210
        %v1794 = vunpack.c.l.b16 %v1211
        %v1795 = vunpack.c.l.b16 %v1212
        %v1796 = vunpack.c.l.b16 %v1213
        %v1797 = vunpack.c.l.b16 %v1214
        %v1798 = vunpack.c.l.b16 %v1215
        %v1799 = vunpack.c.l.b16 %v1216
        %v1800 = vunpack.c.l.b16 %v1217
        %v1801 = vunpack.c.l.b16 %v1218
        %v1802 = vunpack.c.l.b16 %v1219
        %v1803 = vunpack.c.l.b16 %v1220
        %v1804 = vunpack.c.l.b16 %v1221
        %v1805 = vunpack.c.l.b16 %v1222
        %v1806 = vunpack.c.l.b16 %v1223
        %v1807 = vunpack.c.l.b16 %v1224
        %v1808 = vunpack.c.l.b16 %v1225
        %v1809 = vunpack.c.l.b16 %v1226
        %v1810 = vunpack.c.l.b16 %v1227
        %v1811 = vunpack.c.l.b16 %v1228
        %v1812 = vunpack.c.l.b16 %v1229
        %v1813 = vunpack.c.l.b16 %v1230
        %v1814 = vunpack.c.l.b16 %v1231
        %v1815 = vunpack.c.l.b16 %v1232
        %v1816 = vunpack.c.l.b16 %v1233
        %v1817 = vunpack.c.l.b16 %v1234
        %v1818 = vunpack.c.l.b16 %v1235
        %v1819 = vunpack.c.l.b16 %v1236
        %v1820 = vunpack.c.l.b16 %v1237
        %v1821 = vunpack.c.l.b16 %v1238
        %v1822 = vunpack.c.l.b16 %v1239
        %v1823 = vunpack.c.l.b16 %v1240
        %v1824 = vunpack.c.l.b16 %v1241
        %v1825 = vunpack.c.l.b16 %v1242
        %v1826 = vunpack.c.l.b16 %v1243
        %v1827 = vunpack.c.l.b16 %v1244
        %v1828 = vunpack.c.l.b16 %v1245
        %v1829 = vunpack.c.l.b16 %v1246
        %v1830 = vunpack.c.l.b16 %v1247
        %v1831 = vunpack.c.l.b16 %v1248
        %v1832 = vunpack.c.l.b16 %v1249
        %v1833 = vunpack.c.l.b16 %v1250
        %v1834 = vunpack.c.l.b16 %v1251
        %v1835 = vunpack.c.l.b16 %v1252
        %v1836 = vunpack.c.l.b16 %v1253
        %v1837 = vunpack.c.l.b16 %v1254
        %v1838 = vunpack.c.l.b16 %v1255
        %v1839 = vunpack.c.l.b16 %v1256
        %v1840 = vunpack.c.l.b16 %v1257
        %v1841 = vunpack.c.l.b16 %v1258
        %v1842 = vunpack.c.l.b16 %v1259
        %v1843 = vunpack.c.l.b16 %v1260
        %v1844 = vunpack.c.l.b16 %v1261
        %v1845 = vunpack.c.l.b16 %v1262
        %v1846 = vunpack.c.l.b16 %v1263
        %v1847 = vunpack.c.l.b16 %v1264
        %v1848 = vunpack.c.l.b16 %v1265
        %v1849 = vunpack.c.l.b16 %v1266
        %v1850 = vunpack.c.l.b16 %v1267
        %v1851 = vunpack.c.l.b16 %v1268
        %v1852 = vunpack.c.l.b16 %v1269
        %v1853 = vunpack.c.l.b16 %v1270
        %v1854 = vunpack.c.l.b16 %v1271
        %v1855 = vunpack.c.l.b16 %v1272
        %v1856 = vunpack.c.l.b16 %v1273
        %v1857 = vunpack.c.l.b16 %v1274
        %v1858 = vunpack.c.l.b16 %v1275
        %v1859 = vunpack.c.l.b16 %v1276
        %v1860 = vunpack.c.l.b16 %v1277
        %v1861 = vunpack.c.l.b16 %v1278
        %v1862 = vunpack.c.l.b16 %v1279
        %v1863 = vunpack.c.l.b16 %v1280
        %v1864 = vunpack.c.l.b16 %v1281
        %v1865 = vunpack.c.l.b16 %v1282
        %v1866 = vunpack.c.l.b16 %v1283
        %v1867 = vunpack.c.l.b16 %v1284
        %v1868 = vunpack.c.l.b16 %v1285
        %v1869 = vpack.c.b16 %v1726, %v1725
        %v1870 = vpack.c.b16 %v1728, %v1727
        %v1871 = vpack.c.b16 %v1730, %v1729
        %v1872 = vpack.c.b16 %v1732, %v1731
        %v1873 = vpack.c.b16 %v1734, %v1733
        %v1874 = vpack.c.b16 %v1736, %v1735
        %v1875 = vpack.c.b16 %v1738, %v1737
        %v1876 = vpack.c.b16 %v1740, %v1739
        %v1877 = vpack.c.b16 %v1742, %v1741
        %v1878 = vpack.c.b16 %v1744, %v1743
        %v1879 = vpack.c.b16 %v1746, %v1745
        %v1880 = vpack.c.b16 %v1748, %v1747
        %v1881 = vpack.c.b16 %v1750, %v1749
        %v1882 = vpack.c.b16 %v1752, %v1751
        %v1883 = vpack.c.b16 %v1754, %v1753
        %v1884 = vpack.c.b16 %v1756, %v1755
        %v1885 = vpack.c.b16 %v1758, %v1757
        %v1886 = vpack.c.b16 %v1760, %v1759
        %v1887 = vpack.c.b16 %v1762, %v1761
        %v1888 = vpack.c.b16 %v1764, %v1763
        %v1889 = vpack.c.b16 %v1766, %v1765
        %v1890 = vpack.c.b16 %v1768, %v1767
        %v1891 = vpack.c.b16 %v1770, %v1769
        %v1892 = vpack.c.b16 %v1772, %v1771
        %v1893 = vpack.c.b16 %v1774, %v1773
        %v1894 = vpack.c.b16 %v1776, %v1775
        %v1895 = vpack.c.b16 %v1778, %v1777
        %v1896 = vpack.c.b16 %v1780, %v1779
        %v1897 = vpack.c.b16 %v1782, %v1781
        %v1898 = vpack.c.b16 %v1784, %v1783
        %v1899 = vpack.c.b16 %v1786, %v1785
        %v1900 = vpack.c.b16 %v1788, %v1787
        %v1901 = vpack.c.b16 %v1790, %v1789
        %v1902 = vpack.c.b16 %v1792, %v1791
        %v1903 = vpack.c.b16 %v1794, %v1793
        %v1904 = vpack.c.b16 %v1796, %v1795
        %v1905 = vpack.c.b16 %v1798, %v1797
        %v1906 = vpack.c.b16 %v1800, %v1799
        %v1907 = vpack.c.b16 %v1802, %v1801
        %v1908 = vpack.c.b16 %v1804, %v1803
        %v1909 = vpack.c.b16 %v1806, %v1805
        %v1910 = vpack.c.b16 %v1808, %v1807
        %v1911 = vpack.c.b16 %v1810, %v1809
        %v1912 = vpack.c.b16 %v1812, %v1811
        %v1913 = vpack.c.b16 %v1814, %v1813
        %v1914 = vpack.c.b16 %v1816, %v1815
        %v1915 = vpack.c.b16 %v1818, %v1817
        %v1916 = vpack.c.b16 %v1820, %v1819
        %v1917 = vpack.c.b16 %v1822, %v1821
        %v1918 = vpack.c.b16 %v1824, %v1823
        %v1919 = vpack.c.b16 %v1826, %v1825
        %v1920 = vpack.c.b16 %v1828, %v1827
        %v1921 = vpack.c.b16 %v1830, %v1829
        %v1922 = vpack.c.b16 %v1832, %v1831
        %v1923 = vpack.c.b16 %v1834, %v1833
        %v1924 = vpack.c.b16 %v1836, %v1835
        %v1925 = vpack.c.b16 %v1838, %v1837
        %v1926 = vpack.c.b16 %v1840, %v1839
        %v1927 = vpack.c.b16 %v1842, %v1841
        %v1928 = vpack.c.b16 %v1844, %v1843
        %v1929 = vpack.c.b16 %v1846, %v1845
        %v1930 = vpack.c.b16 %v1848, %v1847
        %v1931 = vpack.c.b16 %v1850, %v1849
        %v1932 = vpack.c.b16 %v1852, %v1851
        %v1933 = vpack.c.b16 %v1854, %v1853
        %v1934 = vpack.c.b16 %v1856, %v1855
        %v1935 = vpack.c.b16 %v1858, %v1857
        %v1936 = vpack.c.b16 %v1860, %v1859
        %v1937 = vpack.c.b16 %v1862, %v1861
        %v1938 = vpack.c.b16 %v1864, %v1863
        %v1939 = vpack.c.b16 %v1866, %v1865
        %v1940 = vpack.c.b16 %v1868, %v1867
        %2013 = vmatprep.subr.bf16.mxu0 0
        %2014 = vmatpush1.bf16.msra.mxu0 %v1869
        %2015 = vmatprep.subr.bf16.mxu0 0
        %2016 = vmatpush1.bf16.msra.mxu0 %v1870
        %2017 = vmatprep.subr.bf16.mxu0 0
        %2018 = vmatpush1.bf16.msra.mxu0 %v1871
        %2019 = vmatprep.subr.bf16.mxu0 0
        %2020 = vmatpush1.bf16.msra.mxu0 %v1872
        %2021 = vmatprep.subr.bf16.mxu0 0
        %2022 = vmatpush1.bf16.msra.mxu0 %v1873
        %2023 = vmatprep.subr.bf16.mxu0 0
        %2024 = vmatpush1.bf16.msra.mxu0 %v1874
        %2025 = vmatprep.subr.bf16.mxu0 0
        %2026 = vmatpush1.bf16.msra.mxu0 %v1875
        %2027 = vmatprep.subr.bf16.mxu0 0
        %2028 = vmatpush1.bf16.msra.mxu0 %v1876
        %2029 = vmatprep.subr.bf16.mxu0 0
        %2030 = vmatpush1.bf16.msra.mxu0 %v1877
        %2031 = vmatprep.subr.bf16.mxu0 0
        %2032 = vmatpush1.bf16.msra.mxu0 %v1878
        %2033 = vmatprep.subr.bf16.mxu0 0
        %2034 = vmatpush1.bf16.msra.mxu0 %v1879
        %2035 = vmatprep.subr.bf16.mxu0 0
        %2036 = vmatpush1.bf16.msra.mxu0 %v1880
        %2037 = vmatprep.subr.bf16.mxu0 0
        %2038 = vmatpush1.bf16.msra.mxu0 %v1881
        %2039 = vmatprep.subr.bf16.mxu0 0
        %2040 = vmatpush1.bf16.msra.mxu0 %v1882
        %2041 = vmatprep.subr.bf16.mxu0 0
        %2042 = vmatpush1.bf16.msra.mxu0 %v1883
        %2043 = vmatprep.subr.bf16.mxu0 0
        %2044 = vmatpush1.bf16.msra.mxu0 %v1884
        %2045 = vmatprep.mubr.bf16.mxu0 %v1294
        %2046 = vmatmul.mubr.bf16.gmra.mrb[0].mxu0 %v1293
        %v2047 = vpop.f32.mrb[0].mxu0
        %v2048 = vadd.f32 %v1291, %v2047
        %v2049 = vpop.f32.mrb[0].mxu0
        %v2050 = vpop.f32.mrb[0].mxu0
        %v2051 = vadd.f32 %v1291, %v2050
        %v2052 = vpop.f32.mrb[0].mxu0
        %2053 = vmatprep.mubr.bf16.mxu0 %v1303
        %2054 = vmatmul.mubr.bf16.gmra.mrb[0].mxu0 %v1302
        %v2055 = vpop.f32.mrb[0].mxu0
        %v2056 = vadd.f32 %v1291, %v2055
        %v2057 = vpop.f32.mrb[0].mxu0
        %v2058 = vpop.f32.mrb[0].mxu0
        %v2059 = vadd.f32 %v1291, %v2058
        %v2060 = vpop.f32.mrb[0].mxu0
        %2061 = vmatprep.mubr.bf16.mxu0 %v1312
        %2062 = vmatmul.mubr.bf16.gmra.mrb[0].mxu0 %v1311
        %v2063 = vpop.f32.mrb[0].mxu0
        %v2064 = vadd.f32 %v1291, %v2063
        %v2065 = vpop.f32.mrb[0].mxu0
        %v2066 = vpop.f32.mrb[0].mxu0
        %v2067 = vadd.f32 %v1291, %v2066
        %v2068 = vpop.f32.mrb[0].mxu0
        %2069 = vmatprep.mubr.bf16.mxu0 %v1321
        %2070 = vmatmul.mubr.bf16.gmra.mrb[0].mxu0 %v1320
        %v2071 = vpop.f32.mrb[0].mxu0
        %v2072 = vadd.f32 %v1291, %v2071
        %v2073 = vpop.f32.mrb[0].mxu0
        %v2074 = vpop.f32.mrb[0].mxu0
        %v2075 = vadd.f32 %v1291, %v2074
        %v2076 = vpop.f32.mrb[0].mxu0
        %2077 = vmatprep.mubr.bf16.mxu0 %v1330
        %2078 = vmatmul.mubr.bf16.gmra.mrb[0].mxu0 %v1329
        %v2079 = vpop.f32.mrb[0].mxu0
        %v2080 = vadd.f32 %v1291, %v2079
        %v2081 = vpop.f32.mrb[0].mxu0
        %v2082 = vpop.f32.mrb[0].mxu0
        %v2083 = vadd.f32 %v1291, %v2082
        %v2084 = vpop.f32.mrb[0].mxu0
        %2085 = vmatprep.mubr.bf16.mxu0 %v1339
        %2086 = vmatmul.mubr.bf16.gmra.mrb[0].mxu0 %v1338
        %v2087 = vpop.f32.mrb[0].mxu0
        %v2088 = vadd.f32 %v1291, %v2087
        %v2089 = vpop.f32.mrb[0].mxu0
        %v2090 = vpop.f32.mrb[0].mxu0
        %v2091 = vadd.f32 %v1291, %v2090
        %v2092 = vpop.f32.mrb[0].mxu0
        %2093 = vmatprep.mubr.bf16.mxu0 %v1348
        %2094 = vmatmul.mubr.bf16.gmra.mrb[0].mxu0 %v1347
        %v2095 = vpop.f32.mrb[0].mxu0
        %v2096 = vadd.f32 %v1291, %v2095
        %v2097 = vpop.f32.mrb[0].mxu0
        %v2098 = vpop.f32.mrb[0].mxu0
        %v2099 = vadd.f32 %v1291, %v2098
        %v2100 = vpop.f32.mrb[0].mxu0
        %2101 = vmatprep.mubr.bf16.mxu0 %v1357
        %2102 = vmatmul.mubr.bf16.gmra.mrb[0].mxu0 %v1356
        %v2103 = vpop.f32.mrb[0].mxu0
        %v2104 = vadd.f32 %v1291, %v2103
        %v2105 = vpop.f32.mrb[0].mxu0
        %v2106 = vpop.f32.mrb[0].mxu0
        %v2107 = vadd.f32 %v1291, %v2106
        %v2108 = vpop.f32.mrb[0].mxu0
        %2109 = vmatprep.mubr.bf16.mxu0 %v1366
        %2110 = vmatmul.mubr.bf16.gmra.mrb[0].mxu0 %v1365
        %v2111 = vpop.f32.mrb[0].mxu0
        %v2112 = vadd.f32 %v1291, %v2111
        %v2113 = vpop.f32.mrb[0].mxu0
        %v2114 = vpop.f32.mrb[0].mxu0
        %v2115 = vadd.f32 %v1291, %v2114
        %v2116 = vpop.f32.mrb[0].mxu0
        %2117 = vmatprep.mubr.bf16.mxu0 %v1375
        %2118 = vmatmul.mubr.bf16.gmra.mrb[0].mxu0 %v1374
        %v2119 = vpop.f32.mrb[0].mxu0
        %v2120 = vadd.f32 %v1291, %v2119
        %v2121 = vpop.f32.mrb[0].mxu0
        %v2122 = vpop.f32.mrb[0].mxu0
        %v2123 = vadd.f32 %v1291, %v2122
        %v2124 = vpop.f32.mrb[0].mxu0
        %2125 = vmatprep.mubr.bf16.mxu0 %v1384
        %2126 = vmatmul.mubr.bf16.gmra.mrb[0].mxu0 %v1383
        %v2127 = vpop.f32.mrb[0].mxu0
        %v2128 = vadd.f32 %v1291, %v2127
        %v2129 = vpop.f32.mrb[0].mxu0
        %v2130 = vpop.f32.mrb[0].mxu0
        %v2131 = vadd.f32 %v1291, %v2130
        %v2132 = vpop.f32.mrb[0].mxu0
        %2133 = vmatprep.mubr.bf16.mxu0 %v1393
        %2134 = vmatmul.mubr.bf16.gmra.mrb[0].mxu0 %v1392
        %v2135 = vpop.f32.mrb[0].mxu0
        %v2136 = vadd.f32 %v1291, %v2135
        %v2137 = vpop.f32.mrb[0].mxu0
        %v2138 = vpop.f32.mrb[0].mxu0
        %v2139 = vadd.f32 %v1291, %v2138
        %v2140 = vpop.f32.mrb[0].mxu0
        %2141 = vmatprep.mubr.bf16.mxu0 %v1402
        %2142 = vmatmul.mubr.bf16.gmra.mrb[0].mxu0 %v1401
        %v2143 = vpop.f32.mrb[0].mxu0
        %v2144 = vadd.f32 %v1291, %v2143
        %v2145 = vpop.f32.mrb[0].mxu0
        %v2146 = vpop.f32.mrb[0].mxu0
        %v2147 = vadd.f32 %v1291, %v2146
        %v2148 = vpop.f32.mrb[0].mxu0
        %2149 = vmatprep.mubr.bf16.mxu0 %v1411
        %2150 = vmatmul.mubr.bf16.gmra.mrb[0].mxu0 %v1410
        %v2151 = vpop.f32.mrb[0].mxu0
        %v2152 = vadd.f32 %v1291, %v2151
        %v2153 = vpop.f32.mrb[0].mxu0
        %v2154 = vpop.f32.mrb[0].mxu0
        %v2155 = vadd.f32 %v1291, %v2154
        %v2156 = vpop.f32.mrb[0].mxu0
        %2157 = vmatprep.mubr.bf16.mxu0 %v1420
        %2158 = vmatmul.mubr.bf16.gmra.mrb[0].mxu0 %v1419
        %v2159 = vpop.f32.mrb[0].mxu0
        %v2160 = vadd.f32 %v1291, %v2159
        %v2161 = vpop.f32.mrb[0].mxu0
        %v2162 = vpop.f32.mrb[0].mxu0
        %v2163 = vadd.f32 %v1291, %v2162
        %v2164 = vpop.f32.mrb[0].mxu0
        %2165 = vmatprep.mubr.bf16.mxu0 %v1429
        %2166 = vmatmul.mubr.bf16.gmra.mrb[0].mxu0 %v1428
        %v2167 = vpop.f32.mrb[0].mxu0
        %v2168 = vadd.f32 %v1291, %v2167
        %v2169 = vpop.f32.mrb[0].mxu0
        %v2170 = vpop.f32.mrb[0].mxu0
        %v2171 = vadd.f32 %v1291, %v2170
        %v2172 = vpop.f32.mrb[0].mxu0
        %2173 = vdwg.mxu0
        %2174 = vmatprep.subr.bf16.mxu0 0
        %2175 = vmatpush1.bf16.msra.mxu0 %v1885
        %2176 = vmatprep.subr.bf16.mxu0 0
        %2177 = vmatpush1.bf16.msra.mxu0 %v1886
        %2178 = vmatprep.subr.bf16.mxu0 0
        %2179 = vmatpush1.bf16.msra.mxu0 %v1887
        %2180 = vmatprep.subr.bf16.mxu0 0
        %2181 = vmatpush1.bf16.msra.mxu0 %v1888
        %2182 = vmatprep.subr.bf16.mxu0 0
        %2183 = vmatpush1.bf16.msra.mxu0 %v1889
        %2184 = vmatprep.subr.bf16.mxu0 0
        %2185 = vmatpush1.bf16.msra.mxu0 %v1890
        %2186 = vmatprep.subr.bf16.mxu0 0
        %2187 = vmatpush1.bf16.msra.mxu0 %v1891
        %2188 = vmatprep.subr.bf16.mxu0 0
        %2189 = vmatpush1.bf16.msra.mxu0 %v1892
        %2190 = vmatprep.subr.bf16.mxu0 0
        %2191 = vmatpush1.bf16.msra.mxu0 %v1893
        %2192 = vmatprep.subr.bf16.mxu0 0
        %2193 = vmatpush1.bf16.msra.mxu0 %v1894
        %2194 = vmatprep.subr.bf16.mxu0 0
        %2195 = vmatpush1.bf16.msra.mxu0 %v1895
        %2196 = vmatprep.subr.bf16.mxu0 0
        %2197 = vmatpush1.bf16.msra.mxu0 %v1896
        %2198 = vmatprep.subr.bf16.mxu0 0
        %2199 = vmatpush1.bf16.msra.mxu0 %v1897
        %2200 = vmatprep.subr.bf16.mxu0 0
        %2201 = vmatpush1.bf16.msra.mxu0 %v1898
        %2202 = vmatprep.subr.bf16.mxu0 0
        %2203 = vmatpush1.bf16.msra.mxu0 %v1899
        %2204 = vmatprep.subr.bf16.mxu0 0
        %2205 = vmatpush1.bf16.msra.mxu0 %v1900
        %2206 = vmatprep.mubr.bf16.mxu0 %v1296
        %2207 = vmatmul.mubr.bf16.gmra.mrb[0].mxu0 %v1295
        %v2208 = vpop.f32.mrb[0].mxu0
        %v2209 = vadd.f32 %v2048, %v2208
        %v2210 = vpop.f32.mrb[0].mxu0
        %v2211 = vpop.f32.mrb[0].mxu0
        %v2212 = vadd.f32 %v2051, %v2211
        %v2213 = vpop.f32.mrb[0].mxu0
        %2214 = vmatprep.mubr.bf16.mxu0 %v1305
        %2215 = vmatmul.mubr.bf16.gmra.mrb[0].mxu0 %v1304
        %v2216 = vpop.f32.mrb[0].mxu0
        %v2217 = vadd.f32 %v2056, %v2216
        %v2218 = vpop.f32.mrb[0].mxu0
        %v2219 = vpop.f32.mrb[0].mxu0
        %v2220 = vadd.f32 %v2059, %v2219
        %v2221 = vpop.f32.mrb[0].mxu0
        %2222 = vmatprep.mubr.bf16.mxu0 %v1314
        %2223 = vmatmul.mubr.bf16.gmra.mrb[0].mxu0 %v1313
        %v2224 = vpop.f32.mrb[0].mxu0
        %v2225 = vadd.f32 %v2064, %v2224
        %v2226 = vpop.f32.mrb[0].mxu0
        %v2227 = vpop.f32.mrb[0].mxu0
        %v2228 = vadd.f32 %v2067, %v2227
        %v2229 = vpop.f32.mrb[0].mxu0
        %2230 = vmatprep.mubr.bf16.mxu0 %v1323
        %2231 = vmatmul.mubr.bf16.gmra.mrb[0].mxu0 %v1322
        %v2232 = vpop.f32.mrb[0].mxu0
        %v2233 = vadd.f32 %v2072, %v2232
        %v2234 = vpop.f32.mrb[0].mxu0
        %v2235 = vpop.f32.mrb[0].mxu0
        %v2236 = vadd.f32 %v2075, %v2235
        %v2237 = vpop.f32.mrb[0].mxu0
        %2238 = vmatprep.mubr.bf16.mxu0 %v1332
        %2239 = vmatmul.mubr.bf16.gmra.mrb[0].mxu0 %v1331
        %v2240 = vpop.f32.mrb[0].mxu0
        %v2241 = vadd.f32 %v2080, %v2240
        %v2242 = vpop.f32.mrb[0].mxu0
        %v2243 = vpop.f32.mrb[0].mxu0
        %v2244 = vadd.f32 %v2083, %v2243
        %v2245 = vpop.f32.mrb[0].mxu0
        %2246 = vmatprep.mubr.bf16.mxu0 %v1341
        %2247 = vmatmul.mubr.bf16.gmra.mrb[0].mxu0 %v1340
        %v2248 = vpop.f32.mrb[0].mxu0
        %v2249 = vadd.f32 %v2088, %v2248
        %v2250 = vpop.f32.mrb[0].mxu0
        %v2251 = vpop.f32.mrb[0].mxu0
        %v2252 = vadd.f32 %v2091, %v2251
        %v2253 = vpop.f32.mrb[0].mxu0
        %2254 = vmatprep.mubr.bf16.mxu0 %v1350
        %2255 = vmatmul.mubr.bf16.gmra.mrb[0].mxu0 %v1349
        %v2256 = vpop.f32.mrb[0].mxu0
        %v2257 = vadd.f32 %v2096, %v2256
        %v2258 = vpop.f32.mrb[0].mxu0
        %v2259 = vpop.f32.mrb[0].mxu0
        %v2260 = vadd.f32 %v2099, %v2259
        %v2261 = vpop.f32.mrb[0].mxu0
        %2262 = vmatprep.mubr.bf16.mxu0 %v1359
        %2263 = vmatmul.mubr.bf16.gmra.mrb[0].mxu0 %v1358
        %v2264 = vpop.f32.mrb[0].mxu0
        %v2265 = vadd.f32 %v2104, %v2264
        %v2266 = vpop.f32.mrb[0].mxu0
        %v2267 = vpop.f32.mrb[0].mxu0
        %v2268 = vadd.f32 %v2107, %v2267
        %v2269 = vpop.f32.mrb[0].mxu0
        %2270 = vmatprep.mubr.bf16.mxu0 %v1368
        %2271 = vmatmul.mubr.bf16.gmra.mrb[0].mxu0 %v1367
        %v2272 = vpop.f32.mrb[0].mxu0
        %v2273 = vadd.f32 %v2112, %v2272
        %v2274 = vpop.f32.mrb[0].mxu0
        %v2275 = vpop.f32.mrb[0].mxu0
        %v2276 = vadd.f32 %v2115, %v2275
        %v2277 = vpop.f32.mrb[0].mxu0
        %2278 = vmatprep.mubr.bf16.mxu0 %v1377
        %2279 = vmatmul.mubr.bf16.gmra.mrb[0].mxu0 %v1376
        %v2280 = vpop.f32.mrb[0].mxu0
        %v2281 = vadd.f32 %v2120, %v2280
        %v2282 = vpop.f32.mrb[0].mxu0
        %v2283 = vpop.f32.mrb[0].mxu0
        %v2284 = vadd.f32 %v2123, %v2283
        %v2285 = vpop.f32.mrb[0].mxu0
        %2286 = vmatprep.mubr.bf16.mxu0 %v1386
        %2287 = vmatmul.mubr.bf16.gmra.mrb[0].mxu0 %v1385
        %v2288 = vpop.f32.mrb[0].mxu0
        %v2289 = vadd.f32 %v2128, %v2288
        %v2290 = vpop.f32.mrb[0].mxu0
        %v2291 = vpop.f32.mrb[0].mxu0
        %v2292 = vadd.f32 %v2131, %v2291
        %v2293 = vpop.f32.mrb[0].mxu0
        %2294 = vmatprep.mubr.bf16.mxu0 %v1395
        %2295 = vmatmul.mubr.bf16.gmra.mrb[0].mxu0 %v1394
        %v2296 = vpop.f32.mrb[0].mxu0
        %v2297 = vadd.f32 %v2136, %v2296
        %v2298 = vpop.f32.mrb[0].mxu0
        %v2299 = vpop.f32.mrb[0].mxu0
        %v2300 = vadd.f32 %v2139, %v2299
        %v2301 = vpop.f32.mrb[0].mxu0
        %2302 = vmatprep.mubr.bf16.mxu0 %v1404
        %2303 = vmatmul.mubr.bf16.gmra.mrb[0].mxu0 %v1403
        %v2304 = vpop.f32.mrb[0].mxu0
        %v2305 = vadd.f32 %v2144, %v2304
        %v2306 = vpop.f32.mrb[0].mxu0
        %v2307 = vpop.f32.mrb[0].mxu0
        %v2308 = vadd.f32 %v2147, %v2307
        %v2309 = vpop.f32.mrb[0].mxu0
        %2310 = vmatprep.mubr.bf16.mxu0 %v1413
        %2311 = vmatmul.mubr.bf16.gmra.mrb[0].mxu0 %v1412
        %v2312 = vpop.f32.mrb[0].mxu0
        %v2313 = vadd.f32 %v2152, %v2312
        %v2314 = vpop.f32.mrb[0].mxu0
        %v2315 = vpop.f32.mrb[0].mxu0
        %v2316 = vadd.f32 %v2155, %v2315
        %v2317 = vpop.f32.mrb[0].mxu0
        %2318 = vmatprep.mubr.bf16.mxu0 %v1422
        %2319 = vmatmul.mubr.bf16.gmra.mrb[0].mxu0 %v1421
        %v2320 = vpop.f32.mrb[0].mxu0
        %v2321 = vadd.f32 %v2160, %v2320
        %v2322 = vpop.f32.mrb[0].mxu0
        %v2323 = vpop.f32.mrb[0].mxu0
        %v2324 = vadd.f32 %v2163, %v2323
        %v2325 = vpop.f32.mrb[0].mxu0
        %2326 = vmatprep.mubr.bf16.mxu0 %v1431
        %2327 = vmatmul.mubr.bf16.gmra.mrb[0].mxu0 %v1430
        %v2328 = vpop.f32.mrb[0].mxu0
        %v2329 = vadd.f32 %v2168, %v2328
        %v2330 = vpop.f32.mrb[0].mxu0
        %v2331 = vpop.f32.mrb[0].mxu0
        %v2332 = vadd.f32 %v2171, %v2331
        %v2333 = vpop.f32.mrb[0].mxu0
        %2334 = vdwg.mxu0
        %2335 = vmatprep.subr.bf16.mxu0 0
        %2336 = vmatpush1.bf16.msra.mxu0 %v1901
        %2337 = vmatprep.subr.bf16.mxu0 0
        %2338 = vmatpush1.bf16.msra.mxu0 %v1902
        %2339 = vmatprep.subr.bf16.mxu0 0
        %2340 = vmatpush1.bf16.msra.mxu0 %v1903
        %2341 = vmatprep.subr.bf16.mxu0 0
        %2342 = vmatpush1.bf16.msra.mxu0 %v1904
        %2343 = vmatprep.subr.bf16.mxu0 0
        %2344 = vmatpush1.bf16.msra.mxu0 %v1905
        %2345 = vmatprep.subr.bf16.mxu0 0
        %2346 = vmatpush1.bf16.msra.mxu0 %v1906
        %2347 = vmatprep.subr.bf16.mxu0 0
        %2348 = vmatpush1.bf16.msra.mxu0 %v1907
        %2349 = vmatprep.subr.bf16.mxu0 0
        %2350 = vmatpush1.bf16.msra.mxu0 %v1908
        %2351 = vmatprep.subr.bf16.mxu0 0
        %2352 = vmatpush1.bf16.msra.mxu0 %v1909
        %2353 = vmatprep.subr.bf16.mxu0 0
        %2354 = vmatpush1.bf16.msra.mxu0 %v1910
        %2355 = vmatprep.subr.bf16.mxu0 0
        %2356 = vmatpush1.bf16.msra.mxu0 %v1911
        %2357 = vmatprep.subr.bf16.mxu0 0
        %2358 = vmatpush1.bf16.msra.mxu0 %v1912
        %2359 = vmatprep.subr.bf16.mxu0 0
        %2360 = vmatpush1.bf16.msra.mxu0 %v1913
        %2361 = vmatprep.subr.bf16.mxu0 0
        %2362 = vmatpush1.bf16.msra.mxu0 %v1914
        %2363 = vmatprep.subr.bf16.mxu0 0
        %2364 = vmatpush1.bf16.msra.mxu0 %v1915
        %2365 = vmatprep.subr.bf16.mxu0 0
        %2366 = vmatpush1.bf16.msra.mxu0 %v1916
        %2367 = vmatprep.mubr.bf16.mxu0 %v1298
        %2368 = vmatmul.mubr.bf16.gmra.mrb[0].mxu0 %v1297
        %v2369 = vpop.f32.mrb[0].mxu0
        %v2370 = vadd.f32 %v2209, %v2369
        %v2371 = vpop.f32.mrb[0].mxu0
        %v2372 = vpop.f32.mrb[0].mxu0
        %v2373 = vadd.f32 %v2212, %v2372
        %v2374 = vpop.f32.mrb[0].mxu0
        %2375 = vmatprep.mubr.bf16.mxu0 %v1307
        %2376 = vmatmul.mubr.bf16.gmra.mrb[0].mxu0 %v1306
        %v2377 = vpop.f32.mrb[0].mxu0
        %v2378 = vadd.f32 %v2217, %v2377
        %v2379 = vpop.f32.mrb[0].mxu0
        %v2380 = vpop.f32.mrb[0].mxu0
        %v2381 = vadd.f32 %v2220, %v2380
        %v2382 = vpop.f32.mrb[0].mxu0
        %2383 = vmatprep.mubr.bf16.mxu0 %v1316
        %2384 = vmatmul.mubr.bf16.gmra.mrb[0].mxu0 %v1315
        %v2385 = vpop.f32.mrb[0].mxu0
        %v2386 = vadd.f32 %v2225, %v2385
        %v2387 = vpop.f32.mrb[0].mxu0
        %v2388 = vpop.f32.mrb[0].mxu0
        %v2389 = vadd.f32 %v2228, %v2388
        %v2390 = vpop.f32.mrb[0].mxu0
        %2391 = vmatprep.mubr.bf16.mxu0 %v1325
        %2392 = vmatmul.mubr.bf16.gmra.mrb[0].mxu0 %v1324
        %v2393 = vpop.f32.mrb[0].mxu0
        %v2394 = vadd.f32 %v2233, %v2393
        %v2395 = vpop.f32.mrb[0].mxu0
        %v2396 = vpop.f32.mrb[0].mxu0
        %v2397 = vadd.f32 %v2236, %v2396
        %v2398 = vpop.f32.mrb[0].mxu0
        %2399 = vmatprep.mubr.bf16.mxu0 %v1334
        %2400 = vmatmul.mubr.bf16.gmra.mrb[0].mxu0 %v1333
        %v2401 = vpop.f32.mrb[0].mxu0
        %v2402 = vadd.f32 %v2241, %v2401
        %v2403 = vpop.f32.mrb[0].mxu0
        %v2404 = vpop.f32.mrb[0].mxu0
        %v2405 = vadd.f32 %v2244, %v2404
        %v2406 = vpop.f32.mrb[0].mxu0
        %2407 = vmatprep.mubr.bf16.mxu0 %v1343
        %2408 = vmatmul.mubr.bf16.gmra.mrb[0].mxu0 %v1342
        %v2409 = vpop.f32.mrb[0].mxu0
        %v2410 = vadd.f32 %v2249, %v2409
        %v2411 = vpop.f32.mrb[0].mxu0
        %v2412 = vpop.f32.mrb[0].mxu0
        %v2413 = vadd.f32 %v2252, %v2412
        %v2414 = vpop.f32.mrb[0].mxu0
        %2415 = vmatprep.mubr.bf16.mxu0 %v1352
        %2416 = vmatmul.mubr.bf16.gmra.mrb[0].mxu0 %v1351
        %v2417 = vpop.f32.mrb[0].mxu0
        %v2418 = vadd.f32 %v2257, %v2417
        %v2419 = vpop.f32.mrb[0].mxu0
        %v2420 = vpop.f32.mrb[0].mxu0
        %v2421 = vadd.f32 %v2260, %v2420
        %v2422 = vpop.f32.mrb[0].mxu0
        %2423 = vmatprep.mubr.bf16.mxu0 %v1361
        %2424 = vmatmul.mubr.bf16.gmra.mrb[0].mxu0 %v1360
        %v2425 = vpop.f32.mrb[0].mxu0
        %v2426 = vadd.f32 %v2265, %v2425
        %v2427 = vpop.f32.mrb[0].mxu0
        %v2428 = vpop.f32.mrb[0].mxu0
        %v2429 = vadd.f32 %v2268, %v2428
        %v2430 = vpop.f32.mrb[0].mxu0
        %2431 = vmatprep.mubr.bf16.mxu0 %v1370
        %2432 = vmatmul.mubr.bf16.gmra.mrb[0].mxu0 %v1369
        %v2433 = vpop.f32.mrb[0].mxu0
        %v2434 = vadd.f32 %v2273, %v2433
        %v2435 = vpop.f32.mrb[0].mxu0
        %v2436 = vpop.f32.mrb[0].mxu0
        %v2437 = vadd.f32 %v2276, %v2436
        %v2438 = vpop.f32.mrb[0].mxu0
        %2439 = vmatprep.mubr.bf16.mxu0 %v1379
        %2440 = vmatmul.mubr.bf16.gmra.mrb[0].mxu0 %v1378
        %v2441 = vpop.f32.mrb[0].mxu0
        %v2442 = vadd.f32 %v2281, %v2441
        %v2443 = vpop.f32.mrb[0].mxu0
        %v2444 = vpop.f32.mrb[0].mxu0
        %v2445 = vadd.f32 %v2284, %v2444
        %v2446 = vpop.f32.mrb[0].mxu0
        %2447 = vmatprep.mubr.bf16.mxu0 %v1388
        %2448 = vmatmul.mubr.bf16.gmra.mrb[0].mxu0 %v1387
        %v2449 = vpop.f32.mrb[0].mxu0
        %v2450 = vadd.f32 %v2289, %v2449
        %v2451 = vpop.f32.mrb[0].mxu0
        %v2452 = vpop.f32.mrb[0].mxu0
        %v2453 = vadd.f32 %v2292, %v2452
        %v2454 = vpop.f32.mrb[0].mxu0
        %2455 = vmatprep.mubr.bf16.mxu0 %v1397
        %2456 = vmatmul.mubr.bf16.gmra.mrb[0].mxu0 %v1396
        %v2457 = vpop.f32.mrb[0].mxu0
        %v2458 = vadd.f32 %v2297, %v2457
        %v2459 = vpop.f32.mrb[0].mxu0
        %v2460 = vpop.f32.mrb[0].mxu0
        %v2461 = vadd.f32 %v2300, %v2460
        %v2462 = vpop.f32.mrb[0].mxu0
        %2463 = vmatprep.mubr.bf16.mxu0 %v1406
        %2464 = vmatmul.mubr.bf16.gmra.mrb[0].mxu0 %v1405
        %v2465 = vpop.f32.mrb[0].mxu0
        %v2466 = vadd.f32 %v2305, %v2465
        %v2467 = vpop.f32.mrb[0].mxu0
        %v2468 = vpop.f32.mrb[0].mxu0
        %v2469 = vadd.f32 %v2308, %v2468
        %v2470 = vpop.f32.mrb[0].mxu0
        %2471 = vmatprep.mubr.bf16.mxu0 %v1415
        %2472 = vmatmul.mubr.bf16.gmra.mrb[0].mxu0 %v1414
        %v2473 = vpop.f32.mrb[0].mxu0
        %v2474 = vadd.f32 %v2313, %v2473
        %v2475 = vpop.f32.mrb[0].mxu0
        %v2476 = vpop.f32.mrb[0].mxu0
        %v2477 = vadd.f32 %v2316, %v2476
        %v2478 = vpop.f32.mrb[0].mxu0
        %2479 = vmatprep.mubr.bf16.mxu0 %v1424
        %2480 = vmatmul.mubr.bf16.gmra.mrb[0].mxu0 %v1423
        %v2481 = vpop.f32.mrb[0].mxu0
        %v2482 = vadd.f32 %v2321, %v2481
        %v2483 = vpop.f32.mrb[0].mxu0
        %v2484 = vpop.f32.mrb[0].mxu0
        %v2485 = vadd.f32 %v2324, %v2484
        %v2486 = vpop.f32.mrb[0].mxu0
        %2487 = vmatprep.mubr.bf16.mxu0 %v1433
        %2488 = vmatmul.mubr.bf16.gmra.mrb[0].mxu0 %v1432
        %v2489 = vpop.f32.mrb[0].mxu0
        %v2490 = vadd.f32 %v2329, %v2489
        %v2491 = vpop.f32.mrb[0].mxu0
        %v2492 = vpop.f32.mrb[0].mxu0
        %v2493 = vadd.f32 %v2332, %v2492
        %v2494 = vpop.f32.mrb[0].mxu0
        %2495 = vdwg.mxu0
        %2496 = vmatprep.subr.bf16.mxu0 0
        %2497 = vmatpush1.bf16.msra.mxu0 %v1917
        %2498 = vmatprep.subr.bf16.mxu0 0
        %2499 = vmatpush1.bf16.msra.mxu0 %v1918
        %2500 = vmatprep.subr.bf16.mxu0 0
        %2501 = vmatpush1.bf16.msra.mxu0 %v1919
        %2502 = vmatprep.subr.bf16.mxu0 0
        %2503 = vmatpush1.bf16.msra.mxu0 %v1920
        %2504 = vmatprep.subr.bf16.mxu0 0
        %2505 = vmatpush1.bf16.msra.mxu0 %v1921
        %2506 = vmatprep.subr.bf16.mxu0 0
        %2507 = vmatpush1.bf16.msra.mxu0 %v1922
        %2508 = vmatprep.subr.bf16.mxu0 0
        %2509 = vmatpush1.bf16.msra.mxu0 %v1923
        %2510 = vmatprep.subr.bf16.mxu0 0
        %2511 = vmatpush1.bf16.msra.mxu0 %v1924
        %2512 = vmatprep.subr.bf16.mxu0 0
        %2513 = vmatpush1.bf16.msra.mxu0 %v1925
        %2514 = vmatprep.subr.bf16.mxu0 0
        %2515 = vmatpush1.bf16.msra.mxu0 %v1926
        %2516 = vmatprep.subr.bf16.mxu0 0
        %2517 = vmatpush1.bf16.msra.mxu0 %v1927
        %2518 = vmatprep.subr.bf16.mxu0 0
        %2519 = vmatpush1.bf16.msra.mxu0 %v1928
        %2520 = vmatprep.subr.bf16.mxu0 0
        %2521 = vmatpush1.bf16.msra.mxu0 %v1929
        %2522 = vmatprep.subr.bf16.mxu0 0
        %2523 = vmatpush1.bf16.msra.mxu0 %v1930
        %2524 = vmatprep.subr.bf16.mxu0 0
        %2525 = vmatpush1.bf16.msra.mxu0 %v1931
        %2526 = vmatprep.subr.bf16.mxu0 0
        %2527 = vmatpush1.bf16.msra.mxu0 %v1932
        %2528 = vmatprep.mubr.bf16.mxu0 %v1300
        %2529 = vmatmul.mubr.bf16.gmra.mrb[0].mxu0 %v1299
        %v2530 = vpop.f32.mrb[0].mxu0
        %v2531 = vadd.f32 %v2370, %v2530
        %v2532 = vpop.f32.mrb[0].mxu0
        %v2533 = vpop.f32.mrb[0].mxu0
        %v2534 = vadd.f32 %v2373, %v2533
        %v2535 = vpop.f32.mrb[0].mxu0
        %2536 = vmatprep.mubr.bf16.mxu0 %v1309
        %2537 = vmatmul.mubr.bf16.gmra.mrb[0].mxu0 %v1308
        %v2538 = vpop.f32.mrb[0].mxu0
        %v2539 = vadd.f32 %v2378, %v2538
        %v2540 = vpop.f32.mrb[0].mxu0
        %v2541 = vpop.f32.mrb[0].mxu0
        %v2542 = vadd.f32 %v2381, %v2541
        %v2543 = vpop.f32.mrb[0].mxu0
        %2544 = vmatprep.mubr.bf16.mxu0 %v1318
        %2545 = vmatmul.mubr.bf16.gmra.mrb[0].mxu0 %v1317
        %v2546 = vpop.f32.mrb[0].mxu0
        %v2547 = vadd.f32 %v2386, %v2546
        %v2548 = vpop.f32.mrb[0].mxu0
        %v2549 = vpop.f32.mrb[0].mxu0
        %v2550 = vadd.f32 %v2389, %v2549
        %v2551 = vpop.f32.mrb[0].mxu0
        %2552 = vmatprep.mubr.bf16.mxu0 %v1327
        %2553 = vmatmul.mubr.bf16.gmra.mrb[0].mxu0 %v1326
        %v2554 = vpop.f32.mrb[0].mxu0
        %v2555 = vadd.f32 %v2394, %v2554
        %v2556 = vpop.f32.mrb[0].mxu0
        %v2557 = vpop.f32.mrb[0].mxu0
        %v2558 = vadd.f32 %v2397, %v2557
        %v2559 = vpop.f32.mrb[0].mxu0
        %2560 = vmatprep.mubr.bf16.mxu0 %v1336
        %2561 = vmatmul.mubr.bf16.gmra.mrb[0].mxu0 %v1335
        %v2562 = vpop.f32.mrb[0].mxu0
        %v2563 = vadd.f32 %v2402, %v2562
        %v2564 = vpop.f32.mrb[0].mxu0
        %v2565 = vpop.f32.mrb[0].mxu0
        %v2566 = vadd.f32 %v2405, %v2565
        %v2567 = vpop.f32.mrb[0].mxu0
        %2568 = vmatprep.mubr.bf16.mxu0 %v1345
        %2569 = vmatmul.mubr.bf16.gmra.mrb[0].mxu0 %v1344
        %v2570 = vpop.f32.mrb[0].mxu0
        %v2571 = vadd.f32 %v2410, %v2570
        %v2572 = vpop.f32.mrb[0].mxu0
        %v2573 = vpop.f32.mrb[0].mxu0
        %v2574 = vadd.f32 %v2413, %v2573
        %v2575 = vpop.f32.mrb[0].mxu0
        %2576 = vmatprep.mubr.bf16.mxu0 %v1354
        %2577 = vmatmul.mubr.bf16.gmra.mrb[0].mxu0 %v1353
        %v2578 = vpop.f32.mrb[0].mxu0
        %v2579 = vadd.f32 %v2418, %v2578
        %v2580 = vpop.f32.mrb[0].mxu0
        %v2581 = vpop.f32.mrb[0].mxu0
        %v2582 = vadd.f32 %v2421, %v2581
        %v2583 = vpop.f32.mrb[0].mxu0
        %2584 = vmatprep.mubr.bf16.mxu0 %v1363
        %2585 = vmatmul.mubr.bf16.gmra.mrb[0].mxu0 %v1362
        %v2586 = vpop.f32.mrb[0].mxu0
        %v2587 = vadd.f32 %v2426, %v2586
        %v2588 = vpop.f32.mrb[0].mxu0
        %v2589 = vpop.f32.mrb[0].mxu0
        %v2590 = vadd.f32 %v2429, %v2589
        %v2591 = vpop.f32.mrb[0].mxu0
        %2592 = vmatprep.mubr.bf16.mxu0 %v1372
        %2593 = vmatmul.mubr.bf16.gmra.mrb[0].mxu0 %v1371
        %v2594 = vpop.f32.mrb[0].mxu0
        %v2595 = vadd.f32 %v2434, %v2594
        %v2596 = vpop.f32.mrb[0].mxu0
        %v2597 = vpop.f32.mrb[0].mxu0
        %v2598 = vadd.f32 %v2437, %v2597
        %v2599 = vpop.f32.mrb[0].mxu0
        %2600 = vmatprep.mubr.bf16.mxu0 %v1381
        %2601 = vmatmul.mubr.bf16.gmra.mrb[0].mxu0 %v1380
        %v2602 = vpop.f32.mrb[0].mxu0
        %v2603 = vadd.f32 %v2442, %v2602
        %v2604 = vpop.f32.mrb[0].mxu0
        %v2605 = vpop.f32.mrb[0].mxu0
        %v2606 = vadd.f32 %v2445, %v2605
        %v2607 = vpop.f32.mrb[0].mxu0
        %2608 = vmatprep.mubr.bf16.mxu0 %v1390
        %2609 = vmatmul.mubr.bf16.gmra.mrb[0].mxu0 %v1389
        %v2610 = vpop.f32.mrb[0].mxu0
        %v2611 = vadd.f32 %v2450, %v2610
        %v2612 = vpop.f32.mrb[0].mxu0
        %v2613 = vpop.f32.mrb[0].mxu0
        %v2614 = vadd.f32 %v2453, %v2613
        %v2615 = vpop.f32.mrb[0].mxu0
        %2616 = vmatprep.mubr.bf16.mxu0 %v1399
        %2617 = vmatmul.mubr.bf16.gmra.mrb[0].mxu0 %v1398
        %v2618 = vpop.f32.mrb[0].mxu0
        %v2619 = vadd.f32 %v2458, %v2618
        %v2620 = vpop.f32.mrb[0].mxu0
        %v2621 = vpop.f32.mrb[0].mxu0
        %v2622 = vadd.f32 %v2461, %v2621
        %v2623 = vpop.f32.mrb[0].mxu0
        %2624 = vmatprep.mubr.bf16.mxu0 %v1408
        %2625 = vmatmul.mubr.bf16.gmra.mrb[0].mxu0 %v1407
        %v2626 = vpop.f32.mrb[0].mxu0
        %v2627 = vadd.f32 %v2466, %v2626
        %v2628 = vpop.f32.mrb[0].mxu0
        %v2629 = vpop.f32.mrb[0].mxu0
        %v2630 = vadd.f32 %v2469, %v2629
        %v2631 = vpop.f32.mrb[0].mxu0
        %2632 = vmatprep.mubr.bf16.mxu0 %v1417
        %2633 = vmatmul.mubr.bf16.gmra.mrb[0].mxu0 %v1416
        %v2634 = vpop.f32.mrb[0].mxu0
        %v2635 = vadd.f32 %v2474, %v2634
        %v2636 = vpop.f32.mrb[0].mxu0
        %v2637 = vpop.f32.mrb[0].mxu0
        %v2638 = vadd.f32 %v2477, %v2637
        %v2639 = vpop.f32.mrb[0].mxu0
        %2640 = vmatprep.mubr.bf16.mxu0 %v1426
        %2641 = vmatmul.mubr.bf16.gmra.mrb[0].mxu0 %v1425
        %v2642 = vpop.f32.mrb[0].mxu0
        %v2643 = vadd.f32 %v2482, %v2642
        %v2644 = vpop.f32.mrb[0].mxu0
        %v2645 = vpop.f32.mrb[0].mxu0
        %v2646 = vadd.f32 %v2485, %v2645
        %v2647 = vpop.f32.mrb[0].mxu0
        %2648 = vmatprep.mubr.bf16.mxu0 %v1435
        %2649 = vmatmul.mubr.bf16.gmra.mrb[0].mxu0 %v1434
        %v2650 = vpop.f32.mrb[0].mxu0
        %v2651 = vadd.f32 %v2490, %v2650
        %v2652 = vpop.f32.mrb[0].mxu0
        %v2653 = vpop.f32.mrb[0].mxu0
        %v2654 = vadd.f32 %v2493, %v2653
        %v2655 = vpop.f32.mrb[0].mxu0
        %2656 = vdwg.mxu0
        %2657 = vmatprep.subr.bf16.mxu0 0
        %2658 = vmatpush1.bf16.msra.mxu0 %v1933
        %2659 = vmatprep.subr.bf16.mxu0 0
        %2660 = vmatpush1.bf16.msra.mxu0 %v1934
        %2661 = vmatprep.subr.bf16.mxu0 0
        %2662 = vmatpush1.bf16.msra.mxu0 %v1935
        %2663 = vmatprep.subr.bf16.mxu0 0
        %2664 = vmatpush1.bf16.msra.mxu0 %v1936
        %2665 = vmatprep.subr.bf16.mxu0 0
        %2666 = vmatpush1.bf16.msra.mxu0 %v1937
        %2667 = vmatprep.subr.bf16.mxu0 0
        %2668 = vmatpush1.bf16.msra.mxu0 %v1938
        %2669 = vmatprep.subr.bf16.mxu0 0
        %2670 = vmatpush1.bf16.msra.mxu0 %v1939
        %2671 = vmatprep.subr.bf16.mxu0 0
        %2672 = vmatpush1.bf16.msra.mxu0 %v1940
        %2673 = vmatprep.subr.bf16.mxu0 0
        %2674 = vmatpush1.bf16.msra.mxu0 0
        %2675 = vmatprep.subr.bf16.mxu0 0
        %2676 = vmatpush1.bf16.msra.mxu0 0
        %2677 = vmatprep.subr.bf16.mxu0 0
        %2678 = vmatpush1.bf16.msra.mxu0 0
        %2679 = vmatprep.subr.bf16.mxu0 0
        %2680 = vmatpush1.bf16.msra.mxu0 0
        %2681 = vmatprep.subr.bf16.mxu0 0
        %2682 = vmatpush1.bf16.msra.mxu0 0
        %2683 = vmatprep.subr.bf16.mxu0 0
        %2684 = vmatpush1.bf16.msra.mxu0 0
        %2685 = vmatprep.subr.bf16.mxu0 0
        %2686 = vmatpush1.bf16.msra.mxu0 0
        %2687 = vmatprep.subr.bf16.mxu0 0
        %2688 = vmatpush1.bf16.msra.mxu0 0
        %2689 = vmatprep.mubr.bf16.mxu0 0
        %2690 = vmatmul.mubr.bf16.gmra.mrb[0].mxu0 %v1301
        %v2691 = vpop.f32.mrb[0].mxu0
        %v2692 = vadd.f32 %v2531, %v2691
        %v2693 = vpop.f32.mrb[0].mxu0
        %v2694 = vpop.f32.mrb[0].mxu0
        %v2695 = vadd.f32 %v2534, %v2694
        %v2696 = vpop.f32.mrb[0].mxu0
        %2697 = vmatprep.mubr.bf16.mxu0 0
        %2698 = vmatmul.mubr.bf16.gmra.mrb[0].mxu0 %v1310
        %v2699 = vpop.f32.mrb[0].mxu0
        %v2700 = vadd.f32 %v2539, %v2699
        %v2701 = vpop.f32.mrb[0].mxu0
        %v2702 = vpop.f32.mrb[0].mxu0
        %v2703 = vadd.f32 %v2542, %v2702
        %v2704 = vpop.f32.mrb[0].mxu0
        %2705 = vmatprep.mubr.bf16.mxu0 0
        %2706 = vmatmul.mubr.bf16.gmra.mrb[0].mxu0 %v1319
        %v2707 = vpop.f32.mrb[0].mxu0
        %v2708 = vadd.f32 %v2547, %v2707
        %v2709 = vpop.f32.mrb[0].mxu0
        %v2710 = vpop.f32.mrb[0].mxu0
        %v2711 = vadd.f32 %v2550, %v2710
        %v2712 = vpop.f32.mrb[0].mxu0
        %2713 = vmatprep.mubr.bf16.mxu0 0
        %2714 = vmatmul.mubr.bf16.gmra.mrb[0].mxu0 %v1328
        %v2715 = vpop.f32.mrb[0].mxu0
        %v2716 = vadd.f32 %v2555, %v2715
        %v2717 = vpop.f32.mrb[0].mxu0
        %v2718 = vpop.f32.mrb[0].mxu0
        %v2719 = vadd.f32 %v2558, %v2718
        %v2720 = vpop.f32.mrb[0].mxu0
        %2721 = vmatprep.mubr.bf16.mxu0 0
        %2722 = vmatmul.mubr.bf16.gmra.mrb[0].mxu0 %v1337
        %v2723 = vpop.f32.mrb[0].mxu0
        %v2724 = vadd.f32 %v2563, %v2723
        %v2725 = vpop.f32.mrb[0].mxu0
        %v2726 = vpop.f32.mrb[0].mxu0
        %v2727 = vadd.f32 %v2566, %v2726
        %v2728 = vpop.f32.mrb[0].mxu0
        %2729 = vmatprep.mubr.bf16.mxu0 0
        %2730 = vmatmul.mubr.bf16.gmra.mrb[0].mxu0 %v1346
        %v2731 = vpop.f32.mrb[0].mxu0
        %v2732 = vadd.f32 %v2571, %v2731
        %v2733 = vpop.f32.mrb[0].mxu0
        %v2734 = vpop.f32.mrb[0].mxu0
        %v2735 = vadd.f32 %v2574, %v2734
        %v2736 = vpop.f32.mrb[0].mxu0
        %2737 = vmatprep.mubr.bf16.mxu0 0
        %2738 = vmatmul.mubr.bf16.gmra.mrb[0].mxu0 %v1355
        %v2739 = vpop.f32.mrb[0].mxu0
        %v2740 = vadd.f32 %v2579, %v2739
        %v2741 = vpop.f32.mrb[0].mxu0
        %v2742 = vpop.f32.mrb[0].mxu0
        %v2743 = vadd.f32 %v2582, %v2742
        %v2744 = vpop.f32.mrb[0].mxu0
        %2745 = vmatprep.mubr.bf16.mxu0 0
        %2746 = vmatmul.mubr.bf16.gmra.mrb[0].mxu0 %v1364
        %v2747 = vpop.f32.mrb[0].mxu0
        %v2748 = vadd.f32 %v2587, %v2747
        %v2749 = vpop.f32.mrb[0].mxu0
        %v2750 = vpop.f32.mrb[0].mxu0
        %v2751 = vadd.f32 %v2590, %v2750
        %v2752 = vpop.f32.mrb[0].mxu0
        %2753 = vmatprep.mubr.bf16.mxu0 0
        %2754 = vmatmul.mubr.bf16.gmra.mrb[0].mxu0 %v1373
        %v2755 = vpop.f32.mrb[0].mxu0
        %v2756 = vadd.f32 %v2595, %v2755
        %v2757 = vpop.f32.mrb[0].mxu0
        %v2758 = vpop.f32.mrb[0].mxu0
        %v2759 = vadd.f32 %v2598, %v2758
        %v2760 = vpop.f32.mrb[0].mxu0
        %2761 = vmatprep.mubr.bf16.mxu0 0
        %2762 = vmatmul.mubr.bf16.gmra.mrb[0].mxu0 %v1382
        %v2763 = vpop.f32.mrb[0].mxu0
        %v2764 = vadd.f32 %v2603, %v2763
        %v2765 = vpop.f32.mrb[0].mxu0
        %v2766 = vpop.f32.mrb[0].mxu0
        %v2767 = vadd.f32 %v2606, %v2766
        %v2768 = vpop.f32.mrb[0].mxu0
        %2769 = vmatprep.mubr.bf16.mxu0 0
        %2770 = vmatmul.mubr.bf16.gmra.mrb[0].mxu0 %v1391
        %v2771 = vpop.f32.mrb[0].mxu0
        %v2772 = vadd.f32 %v2611, %v2771
        %v2773 = vpop.f32.mrb[0].mxu0
        %v2774 = vpop.f32.mrb[0].mxu0
        %v2775 = vadd.f32 %v2614, %v2774
        %v2776 = vpop.f32.mrb[0].mxu0
        %2777 = vmatprep.mubr.bf16.mxu0 0
        %2778 = vmatmul.mubr.bf16.gmra.mrb[0].mxu0 %v1400
        %v2779 = vpop.f32.mrb[0].mxu0
        %v2780 = vadd.f32 %v2619, %v2779
        %v2781 = vpop.f32.mrb[0].mxu0
        %v2782 = vpop.f32.mrb[0].mxu0
        %v2783 = vadd.f32 %v2622, %v2782
        %v2784 = vpop.f32.mrb[0].mxu0
        %2785 = vmatprep.mubr.bf16.mxu0 0
        %2786 = vmatmul.mubr.bf16.gmra.mrb[0].mxu0 %v1409
        %v2787 = vpop.f32.mrb[0].mxu0
        %v2788 = vadd.f32 %v2627, %v2787
        %v2789 = vpop.f32.mrb[0].mxu0
        %v2790 = vpop.f32.mrb[0].mxu0
        %v2791 = vadd.f32 %v2630, %v2790
        %v2792 = vpop.f32.mrb[0].mxu0
        %2793 = vmatprep.mubr.bf16.mxu0 0
        %2794 = vmatmul.mubr.bf16.gmra.mrb[0].mxu0 %v1418
        %v2795 = vpop.f32.mrb[0].mxu0
        %v2796 = vadd.f32 %v2635, %v2795
        %v2797 = vpop.f32.mrb[0].mxu0
        %v2798 = vpop.f32.mrb[0].mxu0
        %v2799 = vadd.f32 %v2638, %v2798
        %v2800 = vpop.f32.mrb[0].mxu0
        %2801 = vmatprep.mubr.bf16.mxu0 0
        %2802 = vmatmul.mubr.bf16.gmra.mrb[0].mxu0 %v1427
        %v2803 = vpop.f32.mrb[0].mxu0
        %v2804 = vadd.f32 %v2643, %v2803
        %v2805 = vpop.f32.mrb[0].mxu0
        %v2806 = vpop.f32.mrb[0].mxu0
        %v2807 = vadd.f32 %v2646, %v2806
        %v2808 = vpop.f32.mrb[0].mxu0
        %2809 = vmatprep.mubr.bf16.mxu0 0
        %2810 = vmatmul.mubr.bf16.gmra.mrb[0].mxu0 %v1436
        %v2811 = vpop.f32.mrb[0].mxu0
        %v2812 = vadd.f32 %v2651, %v2811
        %v2813 = vpop.f32.mrb[0].mxu0
        %v2814 = vpop.f32.mrb[0].mxu0
        %v2815 = vadd.f32 %v2654, %v2814
        %v2816 = vpop.f32.mrb[0].mxu0
        %2817 = vdwg.mxu0
        %s2818 = sld [smem:[#allocation2]]
        %vm2819 = vcmp.gt.f32.partialorder %v2692, 0.0
        %vm2820 = vcmp.gt.f32.partialorder %v2695, 0.0
        %vm2821 = vcmp.gt.f32.partialorder %v2700, 0.0
        %vm2822 = vcmp.gt.f32.partialorder %v2703, 0.0
        %vm2823 = vcmp.gt.f32.partialorder %v2708, 0.0
        %vm2824 = vcmp.gt.f32.partialorder %v2711, 0.0
        %vm2825 = vcmp.gt.f32.partialorder %v2716, 0.0
        %vm2826 = vcmp.gt.f32.partialorder %v2719, 0.0
        %vm2827 = vcmp.gt.f32.partialorder %v2724, 0.0
        %vm2828 = vcmp.gt.f32.partialorder %v2727, 0.0
        %vm2829 = vcmp.gt.f32.partialorder %v2732, 0.0
        %vm2830 = vcmp.gt.f32.partialorder %v2735, 0.0
        %vm2831 = vcmp.gt.f32.partialorder %v2740, 0.0
        %vm2832 = vcmp.gt.f32.partialorder %v2743, 0.0
        %vm2833 = vcmp.gt.f32.partialorder %v2748, 0.0
        %vm2834 = vcmp.gt.f32.partialorder %v2751, 0.0
        %vm2835 = vcmp.gt.f32.partialorder %v2756, 0.0
        %vm2836 = vcmp.gt.f32.partialorder %v2759, 0.0
        %vm2837 = vcmp.gt.f32.partialorder %v2764, 0.0
        %vm2838 = vcmp.gt.f32.partialorder %v2767, 0.0
        %vm2839 = vcmp.gt.f32.partialorder %v2772, 0.0
        %vm2840 = vcmp.gt.f32.partialorder %v2775, 0.0
        %vm2841 = vcmp.gt.f32.partialorder %v2780, 0.0
        %vm2842 = vcmp.gt.f32.partialorder %v2783, 0.0
        %vm2843 = vcmp.gt.f32.partialorder %v2788, 0.0
        %vm2844 = vcmp.gt.f32.partialorder %v2791, 0.0
        %vm2845 = vcmp.gt.f32.partialorder %v2796, 0.0
        %vm2846 = vcmp.gt.f32.partialorder %v2799, 0.0
        %vm2847 = vcmp.gt.f32.partialorder %v2804, 0.0
        %vm2848 = vcmp.gt.f32.partialorder %v2807, 0.0
        %vm2849 = vcmp.gt.f32.partialorder %v2812, 0.0
        %vm2850 = vcmp.gt.f32.partialorder %v2815, 0.0
        %v2851 = vstv %s2818
        %v2852 = vmul.f32 %v2851, %v2692
        %v2853 = vmul.f32 %v2851, %v2695
        %v2854 = vmul.f32 %v2851, %v2700
        %v2855 = vmul.f32 %v2851, %v2703
        %v2856 = vmul.f32 %v2851, %v2708
        %v2857 = vmul.f32 %v2851, %v2711
        %v2858 = vmul.f32 %v2851, %v2716
        %v2859 = vmul.f32 %v2851, %v2719
        %v2860 = vmul.f32 %v2851, %v2724
        %v2861 = vmul.f32 %v2851, %v2727
        %v2862 = vmul.f32 %v2851, %v2732
        %v2863 = vmul.f32 %v2851, %v2735
        %v2864 = vmul.f32 %v2851, %v2740
        %v2865 = vmul.f32 %v2851, %v2743
        %v2866 = vmul.f32 %v2851, %v2748
        %v2867 = vmul.f32 %v2851, %v2751
        %v2868 = vmul.f32 %v2851, %v2756
        %v2869 = vmul.f32 %v2851, %v2759
        %v2870 = vmul.f32 %v2851, %v2764
        %v2871 = vmul.f32 %v2851, %v2767
        %v2872 = vmul.f32 %v2851, %v2772
        %v2873 = vmul.f32 %v2851, %v2775
        %v2874 = vmul.f32 %v2851, %v2780
        %v2875 = vmul.f32 %v2851, %v2783
        %v2876 = vmul.f32 %v2851, %v2788
        %v2877 = vmul.f32 %v2851, %v2791
        %v2878 = vmul.f32 %v2851, %v2796
        %v2879 = vmul.f32 %v2851, %v2799
        %v2880 = vmul.f32 %v2851, %v2804
        %v2881 = vmul.f32 %v2851, %v2807
        %v2882 = vmul.f32 %v2851, %v2812
        %v2883 = vmul.f32 %v2851, %v2815
        %v2884 = vsel %vm2819, %v2692, %v2852
        %v2885 = vsel %vm2820, %v2695, %v2853
        %v2886 = vsel %vm2821, %v2700, %v2854
        %v2887 = vsel %vm2822, %v2703, %v2855
        %v2888 = vsel %vm2823, %v2708, %v2856
        %v2889 = vsel %vm2824, %v2711, %v2857
        %v2890 = vsel %vm2825, %v2716, %v2858
        %v2891 = vsel %vm2826, %v2719, %v2859
        %v2892 = vsel %vm2827, %v2724, %v2860
        %v2893 = vsel %vm2828, %v2727, %v2861
        %v2894 = vsel %vm2829, %v2732, %v2862
        %v2895 = vsel %vm2830, %v2735, %v2863
        %v2896 = vsel %vm2831, %v2740, %v2864
        %v2897 = vsel %vm2832, %v2743, %v2865
        %v2898 = vsel %vm2833, %v2748, %v2866
        %v2899 = vsel %vm2834, %v2751, %v2867
        %v2900 = vsel %vm2835, %v2756, %v2868
        %v2901 = vsel %vm2836, %v2759, %v2869
        %v2902 = vsel %vm2837, %v2764, %v2870
        %v2903 = vsel %vm2838, %v2767, %v2871
        %v2904 = vsel %vm2839, %v2772, %v2872
        %v2905 = vsel %vm2840, %v2775, %v2873
        %v2906 = vsel %vm2841, %v2780, %v2874
        %v2907 = vsel %vm2842, %v2783, %v2875
        %v2908 = vsel %vm2843, %v2788, %v2876
        %v2909 = vsel %vm2844, %v2791, %v2877
        %v2910 = vsel %vm2845, %v2796, %v2878
        %v2911 = vsel %vm2846, %v2799, %v2879
        %v2912 = vsel %vm2847, %v2804, %v2880
        %v2913 = vsel %vm2848, %v2807, %v2881
        %v2914 = vsel %vm2849, %v2812, %v2882
        %v2915 = vsel %vm2850, %v2815, %v2883
        %v2916 = vpack.c.bf16 %v2884, %v2884
        %v2917 = vpack.c.bf16 %v2885, %v2885
        %v2918 = vpack.c.bf16 %v2886, %v2886
        %v2919 = vpack.c.bf16 %v2887, %v2887
        %v2920 = vpack.c.bf16 %v2888, %v2888
        %v2921 = vpack.c.bf16 %v2889, %v2889
        %v2922 = vpack.c.bf16 %v2890, %v2890
        %v2923 = vpack.c.bf16 %v2891, %v2891
        %v2924 = vpack.c.bf16 %v2892, %v2892
        %v2925 = vpack.c.bf16 %v2893, %v2893
        %v2926 = vpack.c.bf16 %v2894, %v2894
        %v2927 = vpack.c.bf16 %v2895, %v2895
        %v2928 = vpack.c.bf16 %v2896, %v2896
        %v2929 = vpack.c.bf16 %v2897, %v2897
        %v2930 = vpack.c.bf16 %v2898, %v2898
        %v2931 = vpack.c.bf16 %v2899, %v2899
        %v2932 = vpack.c.bf16 %v2900, %v2900
        %v2933 = vpack.c.bf16 %v2901, %v2901
        %v2934 = vpack.c.bf16 %v2902, %v2902
        %v2935 = vpack.c.bf16 %v2903, %v2903
        %v2936 = vpack.c.bf16 %v2904, %v2904
        %v2937 = vpack.c.bf16 %v2905, %v2905
        %v2938 = vpack.c.bf16 %v2906, %v2906
        %v2939 = vpack.c.bf16 %v2907, %v2907
        %v2940 = vpack.c.bf16 %v2908, %v2908
        %v2941 = vpack.c.bf16 %v2909, %v2909
        %v2942 = vpack.c.bf16 %v2910, %v2910
        %v2943 = vpack.c.bf16 %v2911, %v2911
        %v2944 = vpack.c.bf16 %v2912, %v2912
        %v2945 = vpack.c.bf16 %v2913, %v2913
        %v2946 = vpack.c.bf16 %v2914, %v2914
        %v2947 = vpack.c.bf16 %v2915, %v2915
        %vm2948 = vcmask 257024
        %2949 = vst.msk [vmem:[%s245] sm:$0xf] %vm2948, %v2916
        %2950 = vst.msk [vmem:[%s245 + $0x4] sm:$0xf] %vm2948, %v2917
        %2951 = vst.msk [vmem:[%s245 + $0x8] sm:$0xf] %vm2948, %v2918
        %2952 = vst.msk [vmem:[%s245 + $0xc] sm:$0xf] %vm2948, %v2919
        %2953 = vst.msk [vmem:[%s245 + $0x10] sm:$0xf] %vm2948, %v2920
        %2954 = vst.msk [vmem:[%s245 + $0x14] sm:$0xf] %vm2948, %v2921
        %2955 = vst.msk [vmem:[%s245 + $0x18] sm:$0xf] %vm2948, %v2922
        %2956 = vst.msk [vmem:[%s245 + $0x1c] sm:$0xf] %vm2948, %v2923
        %2957 = vst.msk [vmem:[%s245 + $0x20] sm:$0xf] %vm2948, %v2924
        %2958 = vst.msk [vmem:[%s245 + $0x24] sm:$0xf] %vm2948, %v2925
        %2959 = vst.msk [vmem:[%s245 + $0x28] sm:$0xf] %vm2948, %v2926
        %2960 = vst.msk [vmem:[%s245 + $0x2c] sm:$0xf] %vm2948, %v2927
        %2961 = vst.msk [vmem:[%s245 + $0x30] sm:$0xf] %vm2948, %v2928
        %2962 = vst.msk [vmem:[%s245 + $0x34] sm:$0xf] %vm2948, %v2929
        %2963 = vst.msk [vmem:[%s245 + $0x38] sm:$0xf] %vm2948, %v2930
        %2964 = vst.msk [vmem:[%s245 + $0x3c] sm:$0xf] %vm2948, %v2931
        %2965 = vst.msk [vmem:[%s245 + $0x40] sm:$0xf] %vm2948, %v2932
        %2966 = vst.msk [vmem:[%s245 + $0x44] sm:$0xf] %vm2948, %v2933
        %2967 = vst.msk [vmem:[%s245 + $0x48] sm:$0xf] %vm2948, %v2934
        %2968 = vst.msk [vmem:[%s245 + $0x4c] sm:$0xf] %vm2948, %v2935
        %2969 = vst.msk [vmem:[%s245 + $0x50] sm:$0xf] %vm2948, %v2936
        %2970 = vst.msk [vmem:[%s245 + $0x54] sm:$0xf] %vm2948, %v2937
        %2971 = vst.msk [vmem:[%s245 + $0x58] sm:$0xf] %vm2948, %v2938
        %2972 = vst.msk [vmem:[%s245 + $0x5c] sm:$0xf] %vm2948, %v2939
        %2973 = vst.msk [vmem:[%s245 + $0x60] sm:$0xf] %vm2948, %v2940
        %2974 = vst.msk [vmem:[%s245 + $0x64] sm:$0xf] %vm2948, %v2941
        %2975 = vst.msk [vmem:[%s245 + $0x68] sm:$0xf] %vm2948, %v2942
        %2976 = vst.msk [vmem:[%s245 + $0x6c] sm:$0xf] %vm2948, %v2943
        %2977 = vst.msk [vmem:[%s245 + $0x70] sm:$0xf] %vm2948, %v2944
        %2978 = vst.msk [vmem:[%s245 + $0x74] sm:$0xf] %vm2948, %v2945
        %2979 = vst.msk [vmem:[%s245 + $0x78] sm:$0xf] %vm2948, %v2946
        %2980 = vst.msk [vmem:[%s245 + $0x7c] sm:$0xf] %vm2948, %v2947
        %s2981 = sand.u32 %s134, 1
        %s2982 = scalar_lea.sflag [#allocation5], %s2981
        %s2983 = sand.u32 %s134, 1
        %s2984 = smul.addr %s2983, 128
        %s2985 = scalar_lea.vmem [#allocation8], %s2984
        // Predicated region
        $region45: #{tpu_custom_call.1} parent=35 // pred_check
          %p2986 = pneg %p144
        $region46: #{tpu_custom_call.1} parent=35 // pred_check_branch
          %2988 = sbr.rel (%p2986) target = $region48
        $region47: #{tpu_custom_call.1} parent=35 // pred_region
          %s2989 = smul.u32 4, %s28
          %s2991 = ssub.s32 2048, 2048
          %2992 = vsyncadd %s2982, %s2991
          %s2993 = smul.addr %s2989, 8
          %s2994 = smul.addr %s27, 32
          %s2995 = sadd.s32 %s2993, %s2994
          %s2996 = smul.addr %s2995, 64
          %s2997 = scalar_lea.hbm %s4, %s2996
          %s2998 = sshll.u32 %s2985, 4
          %s2999 = int_to_ptr.vmem [resolvable:$true] %s2998
          %3004 = dma.vmem_to_hbm [thread:$0]  %s2999, 2048, %s2997, %s2982, 64, 64, 4
        $region48: #{tpu_custom_call.1} parent=35 // pred_fallthru
          _
      $region36: #{tpu_custom_call.1} parent=5 // pred_fallthru
        _
      %p3005 = scmp.le.s32.totalorder 2, %s18
      // Predicated region
      $region49: #{tpu_custom_call.1} parent=5 // pred_check
        %p3006 = pneg %p3005
      $region50: #{tpu_custom_call.1} parent=5 // pred_check_branch
        %3008 = sbr.rel (%p3006) target = $region52
      $region51: #{tpu_custom_call.1} parent=5 // pred_region
        %s3009 = ssub.s32 %s18, 2
        // Predicated region
        $region53: #{tpu_custom_call.1} parent=51 // pred_check
          %p3010 = pneg %p150
        $region54: #{tpu_custom_call.1} parent=51 // pred_check_branch
          %3012 = sbr.rel (%p3010) target = $region56
        $region55: #{tpu_custom_call.1} parent=51 // pred_region
          %s3013 = sand.u32 %s135, 1
          %s3014 = scalar_lea.sflag [#allocation5], %s3013
          %s3015 = sand.u32 %s135, 1
          %s3016 = smul.addr %s3015, 128
          %s3017 = scalar_lea.vmem [#allocation8], %s3016
          %3018 = dma.done %s3014, 2048
        $region56: #{tpu_custom_call.1} parent=51 // pred_fallthru
          _
      $region52: #{tpu_custom_call.1} parent=5 // pred_fallthru
        _
    $region6: #{tpu_custom_call.1} parent=1 // loop_footer
      %s22 = sadd.s32 1, %s18
    $region7: #{tpu_custom_call.1} parent=1 // loop_footer_branch
      %17 = sbr.rel target = $region3
    $region8: #{tpu_custom_call.1} parent=1 // loop_exit
      _
    %3019 = vsyncpa [#allocation4], 1
    %s3020 = scalar_lea.sflag [#allocation4], 1
    %3021 = vsyncpa %s3020, 1
    %3022 = vsyncpa [#allocation7], 1
    %3023 = vsyncpa [#allocation5], 1
    %s3024 = scalar_lea.sflag [#allocation5], 1
    %3025 = vsyncpa %s3024, 1

</llo_original>
